<compile_context>
chip_gen: v7x
topology: tpu7x:2x2x1
jax: 0.10.0
libtpu: 0.0.40
codegen_flags: <defaults>
</compile_context>

<pallas_src>
import functools
import math

import jax
import jax.numpy as jnp
from jax.experimental import pallas as pl
from jax.experimental.pallas import tpu as pltpu

BN_EPS = 1e-5


def _round_up(x, m):
    return (x + m - 1) // m * m


def _pick_batch_tile(n, cout, s_out):
    """Batches per grid step.

    Big enough that the ~0.35us/step pipeline overhead is amortized (target a
    few hundred KB of f32 output per step), but when n allows keep at least 2
    (even) grid steps so the v7x megacore shards the 'parallel' axis across
    both TensorCores.  n % bt must be 0.
    """
    target_bytes = 512 * 1024
    per_batch = max(cout * s_out * 4, 1)
    bt = max(1, min(n, target_bytes // per_batch))
    if n >= 4:
        bt = min(bt, n // 2)          # keep >= 2 parallel steps for megacore
    while n % bt:
        bt -= 1
    return bt


def _stacked_conv(x_ref, w_ref, stk_ref, b, *, tap_offsets, cin, s_out):
    """One batch of the fused-im2col conv as a single MXU dot.

    Each of the k*k taps is a static lane-shifted slice of the flattened
    padded input; the slices are written once into the VMEM scratch (stacked
    on the contraction axis) and consumed by ONE (Cout, kk*Cin)x(kk*Cin,S_OUT)
    bf16 dot with f32 accumulation.
    """
    x32 = x_ref[b].astype(jnp.float32)                   # (Cin, L_IN)
    for t, d in enumerate(tap_offsets):                  # static unroll (k*k)
        stk_ref[pl.ds(t * cin, cin), :] = x32[:, d:d + s_out]
    return jnp.dot(w_ref[...], stk_ref[...].astype(jnp.bfloat16),
                   preferred_element_type=jnp.float32)   # (Cout, S_OUT) f32


def conv_stats_kernel(x_ref, w_ref, mask_ref, stats_ref, stk_ref, *,
                      tap_offsets, cin, s_out, batch_tile, inv_count):
    """Phase 1: per-batch BN partials only; the conv slab never hits HBM.

    stats[b] = [sum_valid(y_b), sum_valid((y_b - mean_b)^2)] per channel
    (exact per-group Welford partials, combined globally in the XLA finalize).
    """
    m = mask_ref[...]                                    # (1, S_OUT)
    for b in range(batch_tile):                          # static unroll
        y = _stacked_conv(x_ref, w_ref, stk_ref, b,
                          tap_offsets=tap_offsets, cin=cin, s_out=s_out)
        ym = y * m
        s = jnp.sum(ym, axis=1, keepdims=True)           # (Cout, 1)
        c = (y - s * inv_count) * m                      # centered, masked
        stats_ref[b, :, 0:1] = s
        stats_ref[b, :, 1:2] = jnp.sum(c * c, axis=1, keepdims=True)


def conv_bn_apply_kernel(x_ref, w_ref, scale_ref, shift_ref, o_ref, stk_ref, *,
                         tap_offsets, cin, s_out, batch_tile):
    """Phase 2: recompute the cheap conv, apply the folded BN affine.

    out = y * (gamma*inv_std) + (beta - mean*gamma*inv_std); the f32 slab is
    written exactly once with lane-dense (multiple-of-128) stores.
    """
    scale = scale_ref[...]                               # (Cout, 1)
    shift = shift_ref[...]                               # (Cout, 1)
    for b in range(batch_tile):                          # static unroll
        y = _stacked_conv(x_ref, w_ref, stk_ref, b,
                          tap_offsets=tap_offsets, cin=cin, s_out=s_out)
        o_ref[b] = y * scale + shift


@functools.partial(jax.jit, static_argnames=("k_size", "stride", "padding"))
def identical_block_forward(x, conv_w, conv_b, bn_gamma, bn_beta,
                            k_size, stride, padding):
    """x: (N, Cin, H, W) NCHW f32; conv_w: (Cout, Cin, k, k); returns NCHW f32."""
    del conv_b  # cancelled exactly: training-mode BatchNorm subtracts batch mean
    if stride != 1:
        # TODO(synk): stride > 1 needs strided tap gathers; this block uses 1.
        raise NotImplementedError("fused conv path implemented for stride=1")

    n, cin, h, w = x.shape
    cout = conv_w.shape[0]
    hp, wp = h + 2 * padding, w + 2 * padding
    oh, ow = hp - k_size + 1, wp - k_size + 1
    s_slab = oh * wp                       # computed slab (incl. row-pad cols)
    s_out = _round_up(s_slab, 128)         # lane-dense output width
    d_max = (k_size - 1) * (wp + 1)        # largest tap offset
    l_in = s_out + d_max                   # flattened, tail-padded input width
    kk = k_size * k_size

    bt = _pick_batch_tile(n, cout, s_out)
    steps = n // bt

    # ---- host prep (cast to bf16 first so pad/flatten copies are bf16) ----
    x_bf = x.astype(jnp.bfloat16)
    xp = jnp.pad(x_bf, ((0, 0), (0, 0), (padding, padding), (padding, padding)))
    x_flat = jnp.pad(xp.reshape(n, cin, hp * wp),
                     ((0, 0), (0, 0), (0, l_in - hp * wp)))

    # (Cout, Cin, kh, kw) -> (Cout, kk*Cin): tap-major, channel-minor, bf16
    w_stacked = conv_w.transpose(0, 2, 3, 1).reshape(cout, kk * cin)
    w_stacked = w_stacked.astype(jnp.bfloat16)

    # valid-column mask over the slab (drops right-pad columns & lane tail)
    idx = jnp.arange(s_out)
    mask = ((idx < s_slab) & ((idx % wp) < ow)).astype(jnp.float32)
    mask = mask.reshape(1, s_out)

    tap_offsets = tuple(kh * wp + kw for kh in range(k_size)
                        for kw in range(k_size))
    count_b = oh * ow                      # valid elems per batch per channel

    # ---- phase 1: per-batch BN partials (tiny output; no conv slab) ----
    stats = pl.pallas_call(
        functools.partial(conv_stats_kernel, tap_offsets=tap_offsets, cin=cin,
                          s_out=s_out, batch_tile=bt, inv_count=1.0 / count_b),
        out_shape=jax.ShapeDtypeStruct((n, cout, 2), jnp.float32),
        grid=(steps,),
        in_specs=[
            pl.BlockSpec((bt, cin, l_in), lambda i: (i, 0, 0)),
            pl.BlockSpec((cout, kk * cin), lambda i: (0, 0)),
            pl.BlockSpec((1, s_out), lambda i: (0, 0)),
        ],
        # last dim 2 -> masked stores; harmless at this (tiny) output size.
        out_specs=pl.BlockSpec((bt, cout, 2), lambda i: (i, 0, 0)),
        scratch_shapes=[pltpu.VMEM((kk * cin, s_out), jnp.float32)],
        compiler_params=pltpu.CompilerParams(
            dimension_semantics=("parallel",)),
    )(x_flat, w_stacked, mask)

    # ---- tiny per-channel finalize: exact group-wise variance combine ----
    sums = stats[:, :, 0]                                # (N, Cout)
    m2s = stats[:, :, 1]                                 # (N, Cout)
    total = n * count_b
    mean = jnp.sum(sums, axis=0) / total                 # (Cout,)
    batch_means = sums / count_b
    var = (jnp.sum(m2s, axis=0)
           + count_b * jnp.sum((batch_means - mean) ** 2, axis=0)) / total
    var = jnp.maximum(var, 0.0)
    inv_std = jax.lax.rsqrt(var + BN_EPS)
    scale = (bn_gamma * inv_std).reshape(cout, 1).astype(jnp.float32)
    shift = (bn_beta - mean * bn_gamma * inv_std).reshape(cout, 1)
    shift = shift.astype(jnp.float32)

    # ---- phase 2: recompute conv + folded BN affine, single slab write ----
    y = pl.pallas_call(
        functools.partial(conv_bn_apply_kernel, tap_offsets=tap_offsets,
                          cin=cin, s_out=s_out, batch_tile=bt),
        out_shape=jax.ShapeDtypeStruct((n, cout, s_out), jnp.float32),
        grid=(steps,),
        in_specs=[
            pl.BlockSpec((bt, cin, l_in), lambda i: (i, 0, 0)),
            pl.BlockSpec((cout, kk * cin), lambda i: (0, 0)),
            pl.BlockSpec((cout, 1), lambda i: (0, 0)),
            pl.BlockSpec((cout, 1), lambda i: (0, 0)),
        ],
        out_specs=pl.BlockSpec((bt, cout, s_out), lambda i: (i, 0, 0)),
        scratch_shapes=[pltpu.VMEM((kk * cin, s_out), jnp.float32)],
        compiler_params=pltpu.CompilerParams(
            dimension_semantics=("parallel",)),
    )(x_flat, w_stacked, scale, shift)

    # drop slab pad columns -> NCHW (single fused slice/reshape, no transpose)
    out = y[:, :, :s_slab].reshape(n, cout, oh, wp)[:, :, :, :ow]
    return out


def reference_forward(x, conv_w, conv_b, bn_gamma, bn_beta, stride, padding):
    y = jax.lax.conv_general_dilated(
        x, conv_w, window_strides=(stride, stride),
        padding=((padding, padding), (padding, padding)),
        dimension_numbers=("NCHW", "OIHW", "NCHW"))
    y = y + conv_b.reshape(1, -1, 1, 1)
    mean = y.mean(axis=(0, 2, 3), keepdims=True)
    var = y.var(axis=(0, 2, 3), keepdims=True)   # biased, BN training mode
    yhat = (y - mean) * jax.lax.rsqrt(var + BN_EPS)
    return bn_gamma.reshape(1, -1, 1, 1) * yhat + bn_beta.reshape(1, -1, 1, 1)


if __name__ == "__main__":
    # Small shapes consistent with the module: Identical_Block(4, 8, 3, 1, 1)
    N, IN_C, OUT_C, H, W = 2, 4, 8, 16, 16
    K_SIZE, STRIDE, PADDING = 3, 1, 1

    key = jax.random.PRNGKey(0)
    kx, kw, kb = jax.random.split(key, 3)

    x = jax.random.normal(kx, (N, IN_C, H, W), dtype=jnp.float32)

    # Deterministic parameter init (Conv2d-style uniform fan-in bound).
    fan_in = IN_C * K_SIZE * K_SIZE
    bound = 1.0 / math.sqrt(fan_in)
    conv_w = jax.random.uniform(kw, (OUT_C, IN_C, K_SIZE, K_SIZE),
                                minval=-bound, maxval=bound, dtype=jnp.float32)
    conv_b = jax.random.uniform(kb, (OUT_C,), minval=-bound, maxval=bound,
                                dtype=jnp.float32)
    bn_gamma = jnp.ones((OUT_C,), dtype=jnp.float32)    # BatchNorm2d default
    bn_beta = jnp.zeros((OUT_C,), dtype=jnp.float32)    # BatchNorm2d default

    out = identical_block_forward(x, conv_w, conv_b, bn_gamma, bn_beta,
                                  k_size=K_SIZE, stride=STRIDE, padding=PADDING)
    out = jax.block_until_ready(out)
    assert out.shape == (N, OUT_C, H, W), out.shape

    # Strict check: reference fed the same bf16-quantized operands (isolates
    # kernel correctness; f32 accumulation in both paths, bias still included
    # in the reference to prove the bias-cancellation is exact).
    xq = x.astype(jnp.bfloat16).astype(jnp.float32)
    wq = conv_w.astype(jnp.bfloat16).astype(jnp.float32)
    ref_q = reference_forward(xq, wq, conv_b, bn_gamma, bn_beta,
                              STRIDE, PADDING)
    assert jnp.allclose(out, ref_q, atol=5e-3, rtol=5e-3)

    # Loose check vs. the pure-f32 module semantics (tolerance reflects the
    # intentional bf16 cast of the MXU operands).
    ref_f32 = reference_forward(x, conv_w, conv_b, bn_gamma, bn_beta,
                                STRIDE, PADDING)
    assert jnp.allclose(out, ref_f32, atol=5e-2, rtol=5e-2)

    print("KERNEL_OK")
</pallas_src>

<mosaic_0001>
module attributes {stable_mosaic.version = 11 : i64} {
  func.func @conv_stats_kernel(%arg0: i32, %arg1: memref<2x4x422xbf16, #tpu.memory_space<vmem>>, %arg2: memref<8x36xbf16, #tpu.memory_space<vmem>>, %arg3: memref<1x384xf32, #tpu.memory_space<vmem>>, %arg4: memref<2x8x2xf32, #tpu.memory_space<vmem>>, %arg5: memref<36x384xf32, #tpu.memory_space<vmem>>) attributes {dimension_semantics = [#tpu.dimension_semantics<parallel>], iteration_bounds = array<i64: 1>, scalar_prefetch = 0 : i64, scratch_operands = 1 : i64, tpu.core_type = #tpu.core_type<tc>, window_params = [{transform_indices = @transform_0, window_bounds = array<i64: 2, 4, 422>}, {pipeline_mode = #tpu.pipeline_mode<synchronous>, transform_indices = @transform_1, window_bounds = array<i64: 8, 36>}, {pipeline_mode = #tpu.pipeline_mode<synchronous>, transform_indices = @transform_2, window_bounds = array<i64: 1, 384>}, {transform_indices = @transform_3, window_bounds = array<i64: 2, 8, 2>}]} {
    %c0 = arith.constant 0 : index
    %c0_0 = arith.constant 0 : index
    %0 = vector.load %arg3[%c0, %c0_0] : memref<1x384xf32, #tpu.memory_space<vmem>>, vector<1x384xf32>
    %c0_1 = arith.constant 0 : index
    %c0_2 = arith.constant 0 : index
    %c0_3 = arith.constant 0 : index
    %1 = vector.load %arg1[%c0_1, %c0_2, %c0_3] : memref<2x4x422xbf16, #tpu.memory_space<vmem>>, vector<1x4x422xbf16>
    %2 = vector.shape_cast %1 : vector<1x4x422xbf16> to vector<4x422xbf16>
    %3 = arith.extf %2 : vector<4x422xbf16> to vector<4x422xf32>
    %4 = vector.extract_strided_slice %3 {offsets = [0, 0], sizes = [4, 384], strides = [1, 1]} : vector<4x422xf32> to vector<4x384xf32>
    %c0_4 = arith.constant 0 : index
    %c0_5 = arith.constant 0 : index
    %5 = vector.load %arg5[%c0_4, %c0_5] : memref<36x384xf32, #tpu.memory_space<vmem>>, vector<4x384xf32>
    tpu.vector_store %arg5[%c0_4, %c0_5], %4 {strides = array<i32>} : memref<36x384xf32, #tpu.memory_space<vmem>>, vector<4x384xf32>,
    %6 = vector.extract_strided_slice %3 {offsets = [0, 1], sizes = [4, 384], strides = [1, 1]} : vector<4x422xf32> to vector<4x384xf32>
    %c4 = arith.constant 4 : index
    %c0_6 = arith.constant 0 : index
    %7 = vector.load %arg5[%c4, %c0_6] : memref<36x384xf32, #tpu.memory_space<vmem>>, vector<4x384xf32>
    tpu.vector_store %arg5[%c4, %c0_6], %6 {strides = array<i32>} : memref<36x384xf32, #tpu.memory_space<vmem>>, vector<4x384xf32>,
    %8 = vector.extract_strided_slice %3 {offsets = [0, 2], sizes = [4, 384], strides = [1, 1]} : vector<4x422xf32> to vector<4x384xf32>
    %c8 = arith.constant 8 : index
    %c0_7 = arith.constant 0 : index
    %9 = vector.load %arg5[%c8, %c0_7] : memref<36x384xf32, #tpu.memory_space<vmem>>, vector<4x384xf32>
    tpu.vector_store %arg5[%c8, %c0_7], %8 {strides = array<i32>} : memref<36x384xf32, #tpu.memory_space<vmem>>, vector<4x384xf32>,
    %10 = vector.extract_strided_slice %3 {offsets = [0, 18], sizes = [4, 384], strides = [1, 1]} : vector<4x422xf32> to vector<4x384xf32>
    %c12 = arith.constant 12 : index
    %c0_8 = arith.constant 0 : index
    %11 = vector.load %arg5[%c12, %c0_8] : memref<36x384xf32, #tpu.memory_space<vmem>>, vector<4x384xf32>
    tpu.vector_store %arg5[%c12, %c0_8], %10 {strides = array<i32>} : memref<36x384xf32, #tpu.memory_space<vmem>>, vector<4x384xf32>,
    %12 = vector.extract_strided_slice %3 {offsets = [0, 19], sizes = [4, 384], strides = [1, 1]} : vector<4x422xf32> to vector<4x384xf32>
    %c16 = arith.constant 16 : index
    %c0_9 = arith.constant 0 : index
    %13 = vector.load %arg5[%c16, %c0_9] : memref<36x384xf32, #tpu.memory_space<vmem>>, vector<4x384xf32>
    tpu.vector_store %arg5[%c16, %c0_9], %12 {strides = array<i32>} : memref<36x384xf32, #tpu.memory_space<vmem>>, vector<4x384xf32>,
    %14 = vector.extract_strided_slice %3 {offsets = [0, 20], sizes = [4, 384], strides = [1, 1]} : vector<4x422xf32> to vector<4x384xf32>
    %c20 = arith.constant 20 : index
    %c0_10 = arith.constant 0 : index
    %15 = vector.load %arg5[%c20, %c0_10] : memref<36x384xf32, #tpu.memory_space<vmem>>, vector<4x384xf32>
    tpu.vector_store %arg5[%c20, %c0_10], %14 {strides = array<i32>} : memref<36x384xf32, #tpu.memory_space<vmem>>, vector<4x384xf32>,
    %16 = vector.extract_strided_slice %3 {offsets = [0, 36], sizes = [4, 384], strides = [1, 1]} : vector<4x422xf32> to vector<4x384xf32>
    %c24 = arith.constant 24 : index
    %c0_11 = arith.constant 0 : index
    %17 = vector.load %arg5[%c24, %c0_11] : memref<36x384xf32, #tpu.memory_space<vmem>>, vector<4x384xf32>
    tpu.vector_store %arg5[%c24, %c0_11], %16 {strides = array<i32>} : memref<36x384xf32, #tpu.memory_space<vmem>>, vector<4x384xf32>,
    %18 = vector.extract_strided_slice %3 {offsets = [0, 37], sizes = [4, 384], strides = [1, 1]} : vector<4x422xf32> to vector<4x384xf32>
    %c28 = arith.constant 28 : index
    %c0_12 = arith.constant 0 : index
    %19 = vector.load %arg5[%c28, %c0_12] : memref<36x384xf32, #tpu.memory_space<vmem>>, vector<4x384xf32>
    tpu.vector_store %arg5[%c28, %c0_12], %18 {strides = array<i32>} : memref<36x384xf32, #tpu.memory_space<vmem>>, vector<4x384xf32>,
    %20 = vector.extract_strided_slice %3 {offsets = [0, 38], sizes = [4, 384], strides = [1, 1]} : vector<4x422xf32> to vector<4x384xf32>
    %c32 = arith.constant 32 : index
    %c0_13 = arith.constant 0 : index
    %21 = vector.load %arg5[%c32, %c0_13] : memref<36x384xf32, #tpu.memory_space<vmem>>, vector<4x384xf32>
    tpu.vector_store %arg5[%c32, %c0_13], %20 {strides = array<i32>} : memref<36x384xf32, #tpu.memory_space<vmem>>, vector<4x384xf32>,
    %c0_14 = arith.constant 0 : index
    %c0_15 = arith.constant 0 : index
    %22 = vector.load %arg2[%c0_14, %c0_15] : memref<8x36xbf16, #tpu.memory_space<vmem>>, vector<8x36xbf16>
    %c0_16 = arith.constant 0 : index
    %c0_17 = arith.constant 0 : index
    %23 = vector.load %arg5[%c0_16, %c0_17] : memref<36x384xf32, #tpu.memory_space<vmem>>, vector<36x384xf32>
    %24 = arith.truncf %23 : vector<36x384xf32> to vector<36x384xbf16>
    %cst = arith.constant dense<0.000000e+00> : vector<8x384xf32>
    %25 = tpu.matmul %22, %24, %cst {dimension_numbers = #tpu.dot_dimension_numbers<[1], [0], [0], [1], [0, 0, 1, 1], [], []>} : vector<8x36xbf16>, vector<36x384xbf16>, vector<8x384xf32> -> vector<8x384xf32>
    %26 = vector.broadcast %0 : vector<1x384xf32> to vector<8x384xf32>
    %27 = arith.mulf %25, %26 : vector<8x384xf32>
    %cst_18 = arith.constant dense<0.000000e+00> : vector<8xf32>
    %28 = vector.multi_reduction <add>, %27, %cst_18 [1] : vector<8x384xf32> to vector<8xf32>
    %29 = vector.shape_cast %28 : vector<8xf32> to vector<8x1xf32>
    %cst_19 = arith.constant 3.906250e-03 : f32
    %30 = vector.broadcast %cst_19 : f32 to vector<8x1xf32>
    %31 = arith.mulf %29, %30 : vector<8x1xf32>
    %32 = vector.broadcast %31 : vector<8x1xf32> to vector<8x384xf32>
    %33 = arith.subf %25, %32 : vector<8x384xf32>
    %34 = vector.broadcast %0 : vector<1x384xf32> to vector<8x384xf32>
    %35 = arith.mulf %33, %34 : vector<8x384xf32>
    %c0_20 = arith.constant 0 : index
    %c0_21 = arith.constant 0 : index
    %c0_22 = arith.constant 0 : index
    %36 = vector.load %arg4[%c0_20, %c0_21, %c0_22] : memref<2x8x2xf32, #tpu.memory_space<vmem>>, vector<1x8x1xf32>
    %37 = vector.shape_cast %36 : vector<1x8x1xf32> to vector<8x1xf32>
    %38 = vector.shape_cast %29 : vector<8x1xf32> to vector<1x8x1xf32>
    tpu.vector_store %arg4[%c0_20, %c0_21, %c0_22], %38 {strides = array<i32>} : memref<2x8x2xf32, #tpu.memory_space<vmem>>, vector<1x8x1xf32>,
    %39 = arith.mulf %35, %35 : vector<8x384xf32>
    %cst_23 = arith.constant dense<0.000000e+00> : vector<8xf32>
    %40 = vector.multi_reduction <add>, %39, %cst_23 [1] : vector<8x384xf32> to vector<8xf32>
    %41 = vector.shape_cast %40 : vector<8xf32> to vector<8x1xf32>
    %c0_24 = arith.constant 0 : index
    %c0_25 = arith.constant 0 : index
    %c1 = arith.constant 1 : index
    %42 = vector.load %arg4[%c0_24, %c0_25, %c1] : memref<2x8x2xf32, #tpu.memory_space<vmem>>, vector<1x8x1xf32>
    %43 = vector.shape_cast %42 : vector<1x8x1xf32> to vector<8x1xf32>
    %44 = vector.shape_cast %41 : vector<8x1xf32> to vector<1x8x1xf32>
    tpu.vector_store %arg4[%c0_24, %c0_25, %c1], %44 {strides = array<i32>} : memref<2x8x2xf32, #tpu.memory_space<vmem>>, vector<1x8x1xf32>,
    %c1_26 = arith.constant 1 : index
    %c0_27 = arith.constant 0 : index
    %c0_28 = arith.constant 0 : index
    %45 = vector.load %arg1[%c1_26, %c0_27, %c0_28] : memref<2x4x422xbf16, #tpu.memory_space<vmem>>, vector<1x4x422xbf16>
    %46 = vector.shape_cast %45 : vector<1x4x422xbf16> to vector<4x422xbf16>
    %47 = arith.extf %46 : vector<4x422xbf16> to vector<4x422xf32>
    %48 = vector.extract_strided_slice %47 {offsets = [0, 0], sizes = [4, 384], strides = [1, 1]} : vector<4x422xf32> to vector<4x384xf32>
    %c0_29 = arith.constant 0 : index
    %c0_30 = arith.constant 0 : index
    %49 = vector.load %arg5[%c0_29, %c0_30] : memref<36x384xf32, #tpu.memory_space<vmem>>, vector<4x384xf32>
    tpu.vector_store %arg5[%c0_29, %c0_30], %48 {strides = array<i32>} : memref<36x384xf32, #tpu.memory_space<vmem>>, vector<4x384xf32>,
    %50 = vector.extract_strided_slice %47 {offsets = [0, 1], sizes = [4, 384], strides = [1, 1]} : vector<4x422xf32> to vector<4x384xf32>
    %c4_31 = arith.constant 4 : index
    %c0_32 = arith.constant 0 : index
    %51 = vector.load %arg5[%c4_31, %c0_32] : memref<36x384xf32, #tpu.memory_space<vmem>>, vector<4x384xf32>
    tpu.vector_store %arg5[%c4_31, %c0_32], %50 {strides = array<i32>} : memref<36x384xf32, #tpu.memory_space<vmem>>, vector<4x384xf32>,
    %52 = vector.extract_strided_slice %47 {offsets = [0, 2], sizes = [4, 384], strides = [1, 1]} : vector<4x422xf32> to vector<4x384xf32>
    %c8_33 = arith.constant 8 : index
    %c0_34 = arith.constant 0 : index
    %53 = vector.load %arg5[%c8_33, %c0_34] : memref<36x384xf32, #tpu.memory_space<vmem>>, vector<4x384xf32>
    tpu.vector_store %arg5[%c8_33, %c0_34], %52 {strides = array<i32>} : memref<36x384xf32, #tpu.memory_space<vmem>>, vector<4x384xf32>,
    %54 = vector.extract_strided_slice %47 {offsets = [0, 18], sizes = [4, 384], strides = [1, 1]} : vector<4x422xf32> to vector<4x384xf32>
    %c12_35 = arith.constant 12 : index
    %c0_36 = arith.constant 0 : index
    %55 = vector.load %arg5[%c12_35, %c0_36] : memref<36x384xf32, #tpu.memory_space<vmem>>, vector<4x384xf32>
    tpu.vector_store %arg5[%c12_35, %c0_36], %54 {strides = array<i32>} : memref<36x384xf32, #tpu.memory_space<vmem>>, vector<4x384xf32>,
    %56 = vector.extract_strided_slice %47 {offsets = [0, 19], sizes = [4, 384], strides = [1, 1]} : vector<4x422xf32> to vector<4x384xf32>
    %c16_37 = arith.constant 16 : index
    %c0_38 = arith.constant 0 : index
    %57 = vector.load %arg5[%c16_37, %c0_38] : memref<36x384xf32, #tpu.memory_space<vmem>>, vector<4x384xf32>
    tpu.vector_store %arg5[%c16_37, %c0_38], %56 {strides = array<i32>} : memref<36x384xf32, #tpu.memory_space<vmem>>, vector<4x384xf32>,
    %58 = vector.extract_strided_slice %47 {offsets = [0, 20], sizes = [4, 384], strides = [1, 1]} : vector<4x422xf32> to vector<4x384xf32>
    %c20_39 = arith.constant 20 : index
    %c0_40 = arith.constant 0 : index
    %59 = vector.load %arg5[%c20_39, %c0_40] : memref<36x384xf32, #tpu.memory_space<vmem>>, vector<4x384xf32>
    tpu.vector_store %arg5[%c20_39, %c0_40], %58 {strides = array<i32>} : memref<36x384xf32, #tpu.memory_space<vmem>>, vector<4x384xf32>,
    %60 = vector.extract_strided_slice %47 {offsets = [0, 36], sizes = [4, 384], strides = [1, 1]} : vector<4x422xf32> to vector<4x384xf32>
    %c24_41 = arith.constant 24 : index
    %c0_42 = arith.constant 0 : index
    %61 = vector.load %arg5[%c24_41, %c0_42] : memref<36x384xf32, #tpu.memory_space<vmem>>, vector<4x384xf32>
    tpu.vector_store %arg5[%c24_41, %c0_42], %60 {strides = array<i32>} : memref<36x384xf32, #tpu.memory_space<vmem>>, vector<4x384xf32>,
    %62 = vector.extract_strided_slice %47 {offsets = [0, 37], sizes = [4, 384], strides = [1, 1]} : vector<4x422xf32> to vector<4x384xf32>
    %c28_43 = arith.constant 28 : index
    %c0_44 = arith.constant 0 : index
    %63 = vector.load %arg5[%c28_43, %c0_44] : memref<36x384xf32, #tpu.memory_space<vmem>>, vector<4x384xf32>
    tpu.vector_store %arg5[%c28_43, %c0_44], %62 {strides = array<i32>} : memref<36x384xf32, #tpu.memory_space<vmem>>, vector<4x384xf32>,
    %64 = vector.extract_strided_slice %47 {offsets = [0, 38], sizes = [4, 384], strides = [1, 1]} : vector<4x422xf32> to vector<4x384xf32>
    %c32_45 = arith.constant 32 : index
    %c0_46 = arith.constant 0 : index
    %65 = vector.load %arg5[%c32_45, %c0_46] : memref<36x384xf32, #tpu.memory_space<vmem>>, vector<4x384xf32>
    tpu.vector_store %arg5[%c32_45, %c0_46], %64 {strides = array<i32>} : memref<36x384xf32, #tpu.memory_space<vmem>>, vector<4x384xf32>,
    %c0_47 = arith.constant 0 : index
    %c0_48 = arith.constant 0 : index
    %66 = vector.load %arg2[%c0_47, %c0_48] : memref<8x36xbf16, #tpu.memory_space<vmem>>, vector<8x36xbf16>
    %c0_49 = arith.constant 0 : index
    %c0_50 = arith.constant 0 : index
    %67 = vector.load %arg5[%c0_49, %c0_50] : memref<36x384xf32, #tpu.memory_space<vmem>>, vector<36x384xf32>
    %68 = arith.truncf %67 : vector<36x384xf32> to vector<36x384xbf16>
    %cst_51 = arith.constant dense<0.000000e+00> : vector<8x384xf32>
    %69 = tpu.matmul %66, %68, %cst_51 {dimension_numbers = #tpu.dot_dimension_numbers<[1], [0], [0], [1], [0, 0, 1, 1], [], []>} : vector<8x36xbf16>, vector<36x384xbf16>, vector<8x384xf32> -> vector<8x384xf32>
    %70 = vector.broadcast %0 : vector<1x384xf32> to vector<8x384xf32>
    %71 = arith.mulf %69, %70 : vector<8x384xf32>
    %cst_52 = arith.constant dense<0.000000e+00> : vector<8xf32>
    %72 = vector.multi_reduction <add>, %71, %cst_52 [1] : vector<8x384xf32> to vector<8xf32>
    %73 = vector.shape_cast %72 : vector<8xf32> to vector<8x1xf32>
    %cst_53 = arith.constant 3.906250e-03 : f32
    %74 = vector.broadcast %cst_53 : f32 to vector<8x1xf32>
    %75 = arith.mulf %73, %74 : vector<8x1xf32>
    %76 = vector.broadcast %75 : vector<8x1xf32> to vector<8x384xf32>
    %77 = arith.subf %69, %76 : vector<8x384xf32>
    %78 = vector.broadcast %0 : vector<1x384xf32> to vector<8x384xf32>
    %79 = arith.mulf %77, %78 : vector<8x384xf32>
    %c1_54 = arith.constant 1 : index
    %c0_55 = arith.constant 0 : index
    %c0_56 = arith.constant 0 : index
    %80 = vector.load %arg4[%c1_54, %c0_55, %c0_56] : memref<2x8x2xf32, #tpu.memory_space<vmem>>, vector<1x8x1xf32>
    %81 = vector.shape_cast %80 : vector<1x8x1xf32> to vector<8x1xf32>
    %82 = vector.shape_cast %73 : vector<8x1xf32> to vector<1x8x1xf32>
    tpu.vector_store %arg4[%c1_54, %c0_55, %c0_56], %82 {strides = array<i32>} : memref<2x8x2xf32, #tpu.memory_space<vmem>>, vector<1x8x1xf32>,
    %83 = arith.mulf %79, %79 : vector<8x384xf32>
    %cst_57 = arith.constant dense<0.000000e+00> : vector<8xf32>
    %84 = vector.multi_reduction <add>, %83, %cst_57 [1] : vector<8x384xf32> to vector<8xf32>
    %85 = vector.shape_cast %84 : vector<8xf32> to vector<8x1xf32>
    %c1_58 = arith.constant 1 : index
    %c0_59 = arith.constant 0 : index
    %c1_60 = arith.constant 1 : index
    %86 = vector.load %arg4[%c1_58, %c0_59, %c1_60] : memref<2x8x2xf32, #tpu.memory_space<vmem>>, vector<1x8x1xf32>
    %87 = vector.shape_cast %86 : vector<1x8x1xf32> to vector<8x1xf32>
    %88 = vector.shape_cast %85 : vector<8x1xf32> to vector<1x8x1xf32>
    tpu.vector_store %arg4[%c1_58, %c0_59, %c1_60], %88 {strides = array<i32>} : memref<2x8x2xf32, #tpu.memory_space<vmem>>, vector<1x8x1xf32>,
    return
  }
  func.func @transform_0(%arg0: i32) -> (i32, i32, i32) {
    %c0_i32 = arith.constant 0 : i32
    %c0_i32_0 = arith.constant 0 : i32
    %c0_i32_1 = arith.constant 0 : i32
    return %arg0, %c0_i32, %c0_i32_0 : i32, i32, i32
  }
  func.func @transform_1(%arg0: i32) -> (i32, i32) {
    %c0_i32 = arith.constant 0 : i32
    %c0_i32_0 = arith.constant 0 : i32
    %c0_i32_1 = arith.constant 0 : i32
    return %c0_i32, %c0_i32_0 : i32, i32
  }
  func.func @transform_2(%arg0: i32) -> (i32, i32) {
    %c0_i32 = arith.constant 0 : i32
    %c0_i32_0 = arith.constant 0 : i32
    %c0_i32_1 = arith.constant 0 : i32
    return %c0_i32, %c0_i32_0 : i32, i32
  }
  func.func @transform_3(%arg0: i32) -> (i32, i32, i32) {
    %c0_i32 = arith.constant 0 : i32
    %c0_i32_0 = arith.constant 0 : i32
    %c0_i32_1 = arith.constant 0 : i32
    return %arg0, %c0_i32, %c0_i32_0 : i32, i32, i32
  }
}

module attributes {stable_mosaic.version = 11 : i64} {
  func.func @conv_bn_apply_kernel(%arg0: i32, %arg1: memref<2x4x422xbf16, #tpu.memory_space<vmem>>, %arg2: memref<8x36xbf16, #tpu.memory_space<vmem>>, %arg3: memref<8x1xf32, #tpu.memory_space<vmem>>, %arg4: memref<8x1xf32, #tpu.memory_space<vmem>>, %arg5: memref<2x8x384xf32, #tpu.memory_space<vmem>>, %arg6: memref<36x384xf32, #tpu.memory_space<vmem>>) attributes {dimension_semantics = [#tpu.dimension_semantics<parallel>], iteration_bounds = array<i64: 1>, scalar_prefetch = 0 : i64, scratch_operands = 1 : i64, tpu.core_type = #tpu.core_type<tc>, window_params = [{transform_indices = @transform_0, window_bounds = array<i64: 2, 4, 422>}, {pipeline_mode = #tpu.pipeline_mode<synchronous>, transform_indices = @transform_1, window_bounds = array<i64: 8, 36>}, {pipeline_mode = #tpu.pipeline_mode<synchronous>, transform_indices = @transform_2, window_bounds = array<i64: 8, 1>}, {pipeline_mode = #tpu.pipeline_mode<synchronous>, transform_indices = @transform_3, window_bounds = array<i64: 8, 1>}, {transform_indices = @transform_4, window_bounds = array<i64: 2, 8, 384>}]} {
    %c0 = arith.constant 0 : index
    %c0_0 = arith.constant 0 : index
    %0 = vector.load %arg3[%c0, %c0_0] : memref<8x1xf32, #tpu.memory_space<vmem>>, vector<8x1xf32>
    %c0_1 = arith.constant 0 : index
    %c0_2 = arith.constant 0 : index
    %1 = vector.load %arg4[%c0_1, %c0_2] : memref<8x1xf32, #tpu.memory_space<vmem>>, vector<8x1xf32>
    %c0_3 = arith.constant 0 : index
    %c0_4 = arith.constant 0 : index
    %c0_5 = arith.constant 0 : index
    %2 = vector.load %arg1[%c0_3, %c0_4, %c0_5] : memref<2x4x422xbf16, #tpu.memory_space<vmem>>, vector<1x4x422xbf16>
    %3 = vector.shape_cast %2 : vector<1x4x422xbf16> to vector<4x422xbf16>
    %4 = arith.extf %3 : vector<4x422xbf16> to vector<4x422xf32>
    %5 = vector.extract_strided_slice %4 {offsets = [0, 0], sizes = [4, 384], strides = [1, 1]} : vector<4x422xf32> to vector<4x384xf32>
    %c0_6 = arith.constant 0 : index
    %c0_7 = arith.constant 0 : index
    %6 = vector.load %arg6[%c0_6, %c0_7] : memref<36x384xf32, #tpu.memory_space<vmem>>, vector<4x384xf32>
    tpu.vector_store %arg6[%c0_6, %c0_7], %5 {strides = array<i32>} : memref<36x384xf32, #tpu.memory_space<vmem>>, vector<4x384xf32>,
    %7 = vector.extract_strided_slice %4 {offsets = [0, 1], sizes = [4, 384], strides = [1, 1]} : vector<4x422xf32> to vector<4x384xf32>
    %c4 = arith.constant 4 : index
    %c0_8 = arith.constant 0 : index
    %8 = vector.load %arg6[%c4, %c0_8] : memref<36x384xf32, #tpu.memory_space<vmem>>, vector<4x384xf32>
    tpu.vector_store %arg6[%c4, %c0_8], %7 {strides = array<i32>} : memref<36x384xf32, #tpu.memory_space<vmem>>, vector<4x384xf32>,
    %9 = vector.extract_strided_slice %4 {offsets = [0, 2], sizes = [4, 384], strides = [1, 1]} : vector<4x422xf32> to vector<4x384xf32>
    %c8 = arith.constant 8 : index
    %c0_9 = arith.constant 0 : index
    %10 = vector.load %arg6[%c8, %c0_9] : memref<36x384xf32, #tpu.memory_space<vmem>>, vector<4x384xf32>
    tpu.vector_store %arg6[%c8, %c0_9], %9 {strides = array<i32>} : memref<36x384xf32, #tpu.memory_space<vmem>>, vector<4x384xf32>,
    %11 = vector.extract_strided_slice %4 {offsets = [0, 18], sizes = [4, 384], strides = [1, 1]} : vector<4x422xf32> to vector<4x384xf32>
    %c12 = arith.constant 12 : index
    %c0_10 = arith.constant 0 : index
    %12 = vector.load %arg6[%c12, %c0_10] : memref<36x384xf32, #tpu.memory_space<vmem>>, vector<4x384xf32>
    tpu.vector_store %arg6[%c12, %c0_10], %11 {strides = array<i32>} : memref<36x384xf32, #tpu.memory_space<vmem>>, vector<4x384xf32>,
    %13 = vector.extract_strided_slice %4 {offsets = [0, 19], sizes = [4, 384], strides = [1, 1]} : vector<4x422xf32> to vector<4x384xf32>
    %c16 = arith.constant 16 : index
    %c0_11 = arith.constant 0 : index
    %14 = vector.load %arg6[%c16, %c0_11] : memref<36x384xf32, #tpu.memory_space<vmem>>, vector<4x384xf32>
    tpu.vector_store %arg6[%c16, %c0_11], %13 {strides = array<i32>} : memref<36x384xf32, #tpu.memory_space<vmem>>, vector<4x384xf32>,
    %15 = vector.extract_strided_slice %4 {offsets = [0, 20], sizes = [4, 384], strides = [1, 1]} : vector<4x422xf32> to vector<4x384xf32>
    %c20 = arith.constant 20 : index
    %c0_12 = arith.constant 0 : index
    %16 = vector.load %arg6[%c20, %c0_12] : memref<36x384xf32, #tpu.memory_space<vmem>>, vector<4x384xf32>
    tpu.vector_store %arg6[%c20, %c0_12], %15 {strides = array<i32>} : memref<36x384xf32, #tpu.memory_space<vmem>>, vector<4x384xf32>,
    %17 = vector.extract_strided_slice %4 {offsets = [0, 36], sizes = [4, 384], strides = [1, 1]} : vector<4x422xf32> to vector<4x384xf32>
    %c24 = arith.constant 24 : index
    %c0_13 = arith.constant 0 : index
    %18 = vector.load %arg6[%c24, %c0_13] : memref<36x384xf32, #tpu.memory_space<vmem>>, vector<4x384xf32>
    tpu.vector_store %arg6[%c24, %c0_13], %17 {strides = array<i32>} : memref<36x384xf32, #tpu.memory_space<vmem>>, vector<4x384xf32>,
    %19 = vector.extract_strided_slice %4 {offsets = [0, 37], sizes = [4, 384], strides = [1, 1]} : vector<4x422xf32> to vector<4x384xf32>
    %c28 = arith.constant 28 : index
    %c0_14 = arith.constant 0 : index
    %20 = vector.load %arg6[%c28, %c0_14] : memref<36x384xf32, #tpu.memory_space<vmem>>, vector<4x384xf32>
    tpu.vector_store %arg6[%c28, %c0_14], %19 {strides = array<i32>} : memref<36x384xf32, #tpu.memory_space<vmem>>, vector<4x384xf32>,
    %21 = vector.extract_strided_slice %4 {offsets = [0, 38], sizes = [4, 384], strides = [1, 1]} : vector<4x422xf32> to vector<4x384xf32>
    %c32 = arith.constant 32 : index
    %c0_15 = arith.constant 0 : index
    %22 = vector.load %arg6[%c32, %c0_15] : memref<36x384xf32, #tpu.memory_space<vmem>>, vector<4x384xf32>
    tpu.vector_store %arg6[%c32, %c0_15], %21 {strides = array<i32>} : memref<36x384xf32, #tpu.memory_space<vmem>>, vector<4x384xf32>,
    %c0_16 = arith.constant 0 : index
    %c0_17 = arith.constant 0 : index
    %23 = vector.load %arg2[%c0_16, %c0_17] : memref<8x36xbf16, #tpu.memory_space<vmem>>, vector<8x36xbf16>
    %c0_18 = arith.constant 0 : index
    %c0_19 = arith.constant 0 : index
    %24 = vector.load %arg6[%c0_18, %c0_19] : memref<36x384xf32, #tpu.memory_space<vmem>>, vector<36x384xf32>
    %25 = arith.truncf %24 : vector<36x384xf32> to vector<36x384xbf16>
    %cst = arith.constant dense<0.000000e+00> : vector<8x384xf32>
    %26 = tpu.matmul %23, %25, %cst {dimension_numbers = #tpu.dot_dimension_numbers<[1], [0], [0], [1], [0, 0, 1, 1], [], []>} : vector<8x36xbf16>, vector<36x384xbf16>, vector<8x384xf32> -> vector<8x384xf32>
    %27 = vector.broadcast %0 : vector<8x1xf32> to vector<8x384xf32>
    %28 = arith.mulf %26, %27 : vector<8x384xf32>
    %29 = vector.broadcast %1 : vector<8x1xf32> to vector<8x384xf32>
    %30 = arith.addf %28, %29 : vector<8x384xf32>
    %c0_20 = arith.constant 0 : index
    %c0_21 = arith.constant 0 : index
    %c0_22 = arith.constant 0 : index
    %31 = vector.load %arg5[%c0_20, %c0_21, %c0_22] : memref<2x8x384xf32, #tpu.memory_space<vmem>>, vector<1x8x384xf32>
    %32 = vector.shape_cast %31 : vector<1x8x384xf32> to vector<8x384xf32>
    %33 = vector.shape_cast %30 : vector<8x384xf32> to vector<1x8x384xf32>
    tpu.vector_store %arg5[%c0_20, %c0_21, %c0_22], %33 {strides = array<i32>} : memref<2x8x384xf32, #tpu.memory_space<vmem>>, vector<1x8x384xf32>,
    %c1 = arith.constant 1 : index
    %c0_23 = arith.constant 0 : index
    %c0_24 = arith.constant 0 : index
    %34 = vector.load %arg1[%c1, %c0_23, %c0_24] : memref<2x4x422xbf16, #tpu.memory_space<vmem>>, vector<1x4x422xbf16>
    %35 = vector.shape_cast %34 : vector<1x4x422xbf16> to vector<4x422xbf16>
    %36 = arith.extf %35 : vector<4x422xbf16> to vector<4x422xf32>
    %37 = vector.extract_strided_slice %36 {offsets = [0, 0], sizes = [4, 384], strides = [1, 1]} : vector<4x422xf32> to vector<4x384xf32>
    %c0_25 = arith.constant 0 : index
    %c0_26 = arith.constant 0 : index
    %38 = vector.load %arg6[%c0_25, %c0_26] : memref<36x384xf32, #tpu.memory_space<vmem>>, vector<4x384xf32>
    tpu.vector_store %arg6[%c0_25, %c0_26], %37 {strides = array<i32>} : memref<36x384xf32, #tpu.memory_space<vmem>>, vector<4x384xf32>,
    %39 = vector.extract_strided_slice %36 {offsets = [0, 1], sizes = [4, 384], strides = [1, 1]} : vector<4x422xf32> to vector<4x384xf32>
    %c4_27 = arith.constant 4 : index
    %c0_28 = arith.constant 0 : index
    %40 = vector.load %arg6[%c4_27, %c0_28] : memref<36x384xf32, #tpu.memory_space<vmem>>, vector<4x384xf32>
    tpu.vector_store %arg6[%c4_27, %c0_28], %39 {strides = array<i32>} : memref<36x384xf32, #tpu.memory_space<vmem>>, vector<4x384xf32>,
    %41 = vector.extract_strided_slice %36 {offsets = [0, 2], sizes = [4, 384], strides = [1, 1]} : vector<4x422xf32> to vector<4x384xf32>
    %c8_29 = arith.constant 8 : index
    %c0_30 = arith.constant 0 : index
    %42 = vector.load %arg6[%c8_29, %c0_30] : memref<36x384xf32, #tpu.memory_space<vmem>>, vector<4x384xf32>
    tpu.vector_store %arg6[%c8_29, %c0_30], %41 {strides = array<i32>} : memref<36x384xf32, #tpu.memory_space<vmem>>, vector<4x384xf32>,
    %43 = vector.extract_strided_slice %36 {offsets = [0, 18], sizes = [4, 384], strides = [1, 1]} : vector<4x422xf32> to vector<4x384xf32>
    %c12_31 = arith.constant 12 : index
    %c0_32 = arith.constant 0 : index
    %44 = vector.load %arg6[%c12_31, %c0_32] : memref<36x384xf32, #tpu.memory_space<vmem>>, vector<4x384xf32>
    tpu.vector_store %arg6[%c12_31, %c0_32], %43 {strides = array<i32>} : memref<36x384xf32, #tpu.memory_space<vmem>>, vector<4x384xf32>,
    %45 = vector.extract_strided_slice %36 {offsets = [0, 19], sizes = [4, 384], strides = [1, 1]} : vector<4x422xf32> to vector<4x384xf32>
    %c16_33 = arith.constant 16 : index
    %c0_34 = arith.constant 0 : index
    %46 = vector.load %arg6[%c16_33, %c0_34] : memref<36x384xf32, #tpu.memory_space<vmem>>, vector<4x384xf32>
    tpu.vector_store %arg6[%c16_33, %c0_34], %45 {strides = array<i32>} : memref<36x384xf32, #tpu.memory_space<vmem>>, vector<4x384xf32>,
    %47 = vector.extract_strided_slice %36 {offsets = [0, 20], sizes = [4, 384], strides = [1, 1]} : vector<4x422xf32> to vector<4x384xf32>
    %c20_35 = arith.constant 20 : index
    %c0_36 = arith.constant 0 : index
    %48 = vector.load %arg6[%c20_35, %c0_36] : memref<36x384xf32, #tpu.memory_space<vmem>>, vector<4x384xf32>
    tpu.vector_store %arg6[%c20_35, %c0_36], %47 {strides = array<i32>} : memref<36x384xf32, #tpu.memory_space<vmem>>, vector<4x384xf32>,
    %49 = vector.extract_strided_slice %36 {offsets = [0, 36], sizes = [4, 384], strides = [1, 1]} : vector<4x422xf32> to vector<4x384xf32>
    %c24_37 = arith.constant 24 : index
    %c0_38 = arith.constant 0 : index
    %50 = vector.load %arg6[%c24_37, %c0_38] : memref<36x384xf32, #tpu.memory_space<vmem>>, vector<4x384xf32>
    tpu.vector_store %arg6[%c24_37, %c0_38], %49 {strides = array<i32>} : memref<36x384xf32, #tpu.memory_space<vmem>>, vector<4x384xf32>,
    %51 = vector.extract_strided_slice %36 {offsets = [0, 37], sizes = [4, 384], strides = [1, 1]} : vector<4x422xf32> to vector<4x384xf32>
    %c28_39 = arith.constant 28 : index
    %c0_40 = arith.constant 0 : index
    %52 = vector.load %arg6[%c28_39, %c0_40] : memref<36x384xf32, #tpu.memory_space<vmem>>, vector<4x384xf32>
    tpu.vector_store %arg6[%c28_39, %c0_40], %51 {strides = array<i32>} : memref<36x384xf32, #tpu.memory_space<vmem>>, vector<4x384xf32>,
    %53 = vector.extract_strided_slice %36 {offsets = [0, 38], sizes = [4, 384], strides = [1, 1]} : vector<4x422xf32> to vector<4x384xf32>
    %c32_41 = arith.constant 32 : index
    %c0_42 = arith.constant 0 : index
    %54 = vector.load %arg6[%c32_41, %c0_42] : memref<36x384xf32, #tpu.memory_space<vmem>>, vector<4x384xf32>
    tpu.vector_store %arg6[%c32_41, %c0_42], %53 {strides = array<i32>} : memref<36x384xf32, #tpu.memory_space<vmem>>, vector<4x384xf32>,
    %c0_43 = arith.constant 0 : index
    %c0_44 = arith.constant 0 : index
    %55 = vector.load %arg2[%c0_43, %c0_44] : memref<8x36xbf16, #tpu.memory_space<vmem>>, vector<8x36xbf16>
    %c0_45 = arith.constant 0 : index
    %c0_46 = arith.constant 0 : index
    %56 = vector.load %arg6[%c0_45, %c0_46] : memref<36x384xf32, #tpu.memory_space<vmem>>, vector<36x384xf32>
    %57 = arith.truncf %56 : vector<36x384xf32> to vector<36x384xbf16>
    %cst_47 = arith.constant dense<0.000000e+00> : vector<8x384xf32>
    %58 = tpu.matmul %55, %57, %cst_47 {dimension_numbers = #tpu.dot_dimension_numbers<[1], [0], [0], [1], [0, 0, 1, 1], [], []>} : vector<8x36xbf16>, vector<36x384xbf16>, vector<8x384xf32> -> vector<8x384xf32>
    %59 = vector.broadcast %0 : vector<8x1xf32> to vector<8x384xf32>
    %60 = arith.mulf %58, %59 : vector<8x384xf32>
    %61 = vector.broadcast %1 : vector<8x1xf32> to vector<8x384xf32>
    %62 = arith.addf %60, %61 : vector<8x384xf32>
    %c1_48 = arith.constant 1 : index
    %c0_49 = arith.constant 0 : index
    %c0_50 = arith.constant 0 : index
    %63 = vector.load %arg5[%c1_48, %c0_49, %c0_50] : memref<2x8x384xf32, #tpu.memory_space<vmem>>, vector<1x8x384xf32>
    %64 = vector.shape_cast %63 : vector<1x8x384xf32> to vector<8x384xf32>
    %65 = vector.shape_cast %62 : vector<8x384xf32> to vector<1x8x384xf32>
    tpu.vector_store %arg5[%c1_48, %c0_49, %c0_50], %65 {strides = array<i32>} : memref<2x8x384xf32, #tpu.memory_space<vmem>>, vector<1x8x384xf32>,
    return
  }
  func.func @transform_0(%arg0: i32) -> (i32, i32, i32) {
    %c0_i32 = arith.constant 0 : i32
    %c0_i32_0 = arith.constant 0 : i32
    %c0_i32_1 = arith.constant 0 : i32
    return %arg0, %c0_i32, %c0_i32_0 : i32, i32, i32
  }
  func.func @transform_1(%arg0: i32) -> (i32, i32) {
    %c0_i32 = arith.constant 0 : i32
    %c0_i32_0 = arith.constant 0 : i32
    %c0_i32_1 = arith.constant 0 : i32
    return %c0_i32, %c0_i32_0 : i32, i32
  }
  func.func @transform_2(%arg0: i32) -> (i32, i32) {
    %c0_i32 = arith.constant 0 : i32
    %c0_i32_0 = arith.constant 0 : i32
    %c0_i32_1 = arith.constant 0 : i32
    return %c0_i32, %c0_i32_0 : i32, i32
  }
  func.func @transform_3(%arg0: i32) -> (i32, i32) {
    %c0_i32 = arith.constant 0 : i32
    %c0_i32_0 = arith.constant 0 : i32
    %c0_i32_1 = arith.constant 0 : i32
    return %c0_i32, %c0_i32_0 : i32, i32
  }
  func.func @transform_4(%arg0: i32) -> (i32, i32, i32) {
    %c0_i32 = arith.constant 0 : i32
    %c0_i32_0 = arith.constant 0 : i32
    %c0_i32_1 = arith.constant 0 : i32
    return %arg0, %c0_i32, %c0_i32_0 : i32, i32, i32
  }
}

</mosaic_0001>

<llo_original>
// kernel: identical_block_forward.3
$region0: #{identical_block_forward.3}
  #allocation0 [shape = 'u32[]', space=smem, size = 0x4, offset = 0x4, fixed_abs, tag = 'smem constant byte address 0x4 - core index']
  #allocation1 [shape = 'u32[144,128]{1,0:T(1,128)}', space=vmem, size = 0x12000, scoped, tag = 'internal scratch']
  #allocation2 [shape = 'f32[36,384]{1,0:T(8,128)}', space=vmem, size = 0xf000, scoped, tag = 'scratch operand']
  %s0 = inlined_call_operand.vmem [shape: bf16[2,4,422], index: 0, kind: input, shape index: {}]
  %s1 = inlined_call_operand.vmem [shape: bf16[8,36], index: 1, kind: input, shape index: {}]
  %s2 = inlined_call_operand.vmem [shape: f32[8,1], index: 2, kind: input, shape index: {}]
  %s3 = inlined_call_operand.vmem [shape: f32[8,1], index: 3, kind: input, shape index: {}]
  %s4 = inlined_call_operand.vmem [shape: f32[2,8,384], index: 4, kind: output, shape index: {}]
  %s5 = sld [smem:[#allocation0]]
  $region26: #{identical_block_forward.3} parent=0
    _
  %s7 = ssub.s32 1, %s5
  %s8 = scalar_select 0, %s7, %s5
  // Predicated region
  $region2: #{identical_block_forward.3} parent=0 // pred_check
    _
  $region3: #{identical_block_forward.3} parent=0 // pred_check_branch
    %10 = sbr.rel (0) target = $region5
  $region4: #{identical_block_forward.3} parent=0 // pred_region
    _
  $region5: #{identical_block_forward.3} parent=0 // pred_fallthru
    _
  // Predicated region
  $region6: #{identical_block_forward.3} parent=0 // pred_check
    _
  $region7: #{identical_block_forward.3} parent=0 // pred_check_branch
    %12 = sbr.rel (0) target = $region9
  $region8: #{identical_block_forward.3} parent=0 // pred_region
    _
  $region9: #{identical_block_forward.3} parent=0 // pred_fallthru
    _
  // Predicated region
  $region10: #{identical_block_forward.3} parent=0 // pred_check
    _
  $region11: #{identical_block_forward.3} parent=0 // pred_check_branch
    %14 = sbr.rel (0) target = $region13
  $region12: #{identical_block_forward.3} parent=0 // pred_region
    _
  $region13: #{identical_block_forward.3} parent=0 // pred_fallthru
    _
  // Predicated region
  $region14: #{identical_block_forward.3} parent=0 // pred_check
    _
  $region15: #{identical_block_forward.3} parent=0 // pred_check_branch
    %16 = sbr.rel (0) target = $region17
  $region16: #{identical_block_forward.3} parent=0 // pred_region
    _
  $region17: #{identical_block_forward.3} parent=0 // pred_fallthru
    _
  %v18 = vld [vmem:[%s2] sm:$0xff]
  %v19 = vld [vmem:[%s3] sm:$0xff]
  %v20 = vld [vmem:[%s0] sm:$0xff]
  %v21 = vunpack.c.l.bf16 %v20
  %v22 = vunpack.c.h.bf16 %v20
  %v25 = vcombine.high %v21, %v21
  %27 = vst [vmem:[#allocation2] sm:$0xf] %v21
  %28 = vst [vmem:[#allocation2 + $0x8] sm:$0xf] %v25
  %29 = vst [vmem:[#allocation2 + $0x10] sm:$0xf] %v22
  %v30 = vcombine.low %v21, %v21
  %v31 = vcombine.low %v22, %v22
  %32 = vrot.lane.b32.xlu0 %v30, 127
  %v33 = vpop.permute.xlu0 %32
  %34 = vrot.lane.b32.xlu0 %v21, 127
  %v35 = vpop.permute.xlu0 %34
  %36 = vrot.lane.b32.xlu0 %v31, 127
  %v37 = vpop.permute.xlu0 %36
  %38 = vrot.lane.b32.xlu0 %v22, 127
  %v39 = vpop.permute.xlu0 %38
  %vm40 = vcmask 1039360
  %v41 = vsel %vm40, %v33, %v35
  %v42 = vsel %vm40, %v35, %v37
  %v43 = vsel %vm40, %v37, %v39
  %47 = vst [vmem:[#allocation2] sm:$0xf0] %v41
  %48 = vst [vmem:[#allocation2 + $0x8] sm:$0xf0] %v42
  %49 = vst [vmem:[#allocation2 + $0x10] sm:$0xf0] %v43
  %v50 = vcombine.high %v22, %v22
  %51 = vrot.lane.b32.xlu0 %v21, 126
  %v52 = vpop.permute.xlu0 %51
  %53 = vrot.lane.b32.xlu0 %v25, 126
  %v54 = vpop.permute.xlu0 %53
  %55 = vrot.lane.b32.xlu0 %v22, 126
  %v56 = vpop.permute.xlu0 %55
  %57 = vrot.lane.b32.xlu0 %v50, 126
  %v58 = vpop.permute.xlu0 %57
  %vm59 = vcmask 1031168
  %v60 = vsel %vm59, %v52, %v54
  %v61 = vsel %vm59, %v54, %v56
  %v62 = vsel %vm59, %v56, %v58
  %66 = vst [vmem:[#allocation2 + $0x18] sm:$0xf] %v60
  %67 = vst [vmem:[#allocation2 + $0x20] sm:$0xf] %v61
  %68 = vst [vmem:[#allocation2 + $0x28] sm:$0xf] %v62
  %69 = vrot.lane.b32.xlu0 %v30, 110
  %v70 = vpop.permute.xlu0 %69
  %71 = vrot.lane.b32.xlu0 %v21, 110
  %v72 = vpop.permute.xlu0 %71
  %73 = vrot.lane.b32.xlu0 %v31, 110
  %v74 = vpop.permute.xlu0 %73
  %75 = vrot.lane.b32.xlu0 %v22, 110
  %v76 = vpop.permute.xlu0 %75
  %vm77 = vcmask 900096
  %v78 = vsel %vm77, %v70, %v72
  %v79 = vsel %vm77, %v72, %v74
  %v80 = vsel %vm77, %v74, %v76
  %84 = vst [vmem:[#allocation2 + $0x18] sm:$0xf0] %v78
  %85 = vst [vmem:[#allocation2 + $0x20] sm:$0xf0] %v79
  %86 = vst [vmem:[#allocation2 + $0x28] sm:$0xf0] %v80
  %87 = vrot.lane.b32.xlu0 %v21, 109
  %v88 = vpop.permute.xlu0 %87
  %89 = vrot.lane.b32.xlu0 %v25, 109
  %v90 = vpop.permute.xlu0 %89
  %91 = vrot.lane.b32.xlu0 %v22, 109
  %v92 = vpop.permute.xlu0 %91
  %93 = vrot.lane.b32.xlu0 %v50, 109
  %v94 = vpop.permute.xlu0 %93
  %vm95 = vcmask 891904
  %v96 = vsel %vm95, %v88, %v90
  %v97 = vsel %vm95, %v90, %v92
  %v98 = vsel %vm95, %v92, %v94
  %102 = vst [vmem:[#allocation2 + $0x30] sm:$0xf] %v96
  %103 = vst [vmem:[#allocation2 + $0x38] sm:$0xf] %v97
  %104 = vst [vmem:[#allocation2 + $0x40] sm:$0xf] %v98
  %105 = vrot.lane.b32.xlu0 %v30, 108
  %v106 = vpop.permute.xlu0 %105
  %107 = vrot.lane.b32.xlu0 %v21, 108
  %v108 = vpop.permute.xlu0 %107
  %109 = vrot.lane.b32.xlu0 %v31, 108
  %v110 = vpop.permute.xlu0 %109
  %111 = vrot.lane.b32.xlu0 %v22, 108
  %v112 = vpop.permute.xlu0 %111
  %vm113 = vcmask 883712
  %v114 = vsel %vm113, %v106, %v108
  %v115 = vsel %vm113, %v108, %v110
  %v116 = vsel %vm113, %v110, %v112
  %120 = vst [vmem:[#allocation2 + $0x30] sm:$0xf0] %v114
  %121 = vst [vmem:[#allocation2 + $0x38] sm:$0xf0] %v115
  %122 = vst [vmem:[#allocation2 + $0x40] sm:$0xf0] %v116
  %123 = vrot.lane.b32.xlu0 %v21, 92
  %v124 = vpop.permute.xlu0 %123
  %125 = vrot.lane.b32.xlu0 %v25, 92
  %v126 = vpop.permute.xlu0 %125
  %127 = vrot.lane.b32.xlu0 %v22, 92
  %v128 = vpop.permute.xlu0 %127
  %129 = vrot.lane.b32.xlu0 %v50, 92
  %v130 = vpop.permute.xlu0 %129
  %vm131 = vcmask 752640
  %v132 = vsel %vm131, %v124, %v126
  %v133 = vsel %vm131, %v126, %v128
  %v134 = vsel %vm131, %v128, %v130
  %138 = vst [vmem:[#allocation2 + $0x48] sm:$0xf] %v132
  %139 = vst [vmem:[#allocation2 + $0x50] sm:$0xf] %v133
  %140 = vst [vmem:[#allocation2 + $0x58] sm:$0xf] %v134
  %141 = vrot.lane.b32.xlu0 %v30, 91
  %v142 = vpop.permute.xlu0 %141
  %143 = vrot.lane.b32.xlu0 %v21, 91
  %v144 = vpop.permute.xlu0 %143
  %145 = vrot.lane.b32.xlu0 %v31, 91
  %v146 = vpop.permute.xlu0 %145
  %147 = vrot.lane.b32.xlu0 %v22, 91
  %v148 = vpop.permute.xlu0 %147
  %vm149 = vcmask 744448
  %v150 = vsel %vm149, %v142, %v144
  %v151 = vsel %vm149, %v144, %v146
  %v152 = vsel %vm149, %v146, %v148
  %156 = vst [vmem:[#allocation2 + $0x48] sm:$0xf0] %v150
  %157 = vst [vmem:[#allocation2 + $0x50] sm:$0xf0] %v151
  %158 = vst [vmem:[#allocation2 + $0x58] sm:$0xf0] %v152
  %159 = vrot.lane.b32.xlu0 %v21, 90
  %v160 = vpop.permute.xlu0 %159
  %161 = vrot.lane.b32.xlu0 %v25, 90
  %v162 = vpop.permute.xlu0 %161
  %163 = vrot.lane.b32.xlu0 %v22, 90
  %v164 = vpop.permute.xlu0 %163
  %165 = vrot.lane.b32.xlu0 %v50, 90
  %v166 = vpop.permute.xlu0 %165
  %vm167 = vcmask 736256
  %v168 = vsel %vm167, %v160, %v162
  %v169 = vsel %vm167, %v162, %v164
  %v170 = vsel %vm167, %v164, %v166
  %174 = vst [vmem:[#allocation2 + $0x60] sm:$0xf] %v168
  %175 = vst [vmem:[#allocation2 + $0x68] sm:$0xf] %v169
  %176 = vst [vmem:[#allocation2 + $0x70] sm:$0xf] %v170
  %v177 = vld [vmem:[%s1] sm:$0xf]
  %v178 = vld [vmem:[#allocation2] sm:$0xff]
  %v179 = vld [vmem:[#allocation2 + $0x8] sm:$0xff]
  %v180 = vld [vmem:[#allocation2 + $0x10] sm:$0xff]
  %v181 = vld [vmem:[#allocation2 + $0x18] sm:$0xff]
  %v182 = vld [vmem:[#allocation2 + $0x20] sm:$0xff]
  %v183 = vld [vmem:[#allocation2 + $0x28] sm:$0xff]
  %v184 = vld [vmem:[#allocation2 + $0x30] sm:$0xff]
  %v185 = vld [vmem:[#allocation2 + $0x38] sm:$0xff]
  %v186 = vld [vmem:[#allocation2 + $0x40] sm:$0xff]
  %v187 = vld [vmem:[#allocation2 + $0x48] sm:$0xff]
  %v188 = vld [vmem:[#allocation2 + $0x50] sm:$0xff]
  %v189 = vld [vmem:[#allocation2 + $0x58] sm:$0xff]
  %v190 = vld [vmem:[#allocation2 + $0x60] sm:$0xf]
  %v191 = vld [vmem:[#allocation2 + $0x68] sm:$0xf]
  %v192 = vld [vmem:[#allocation2 + $0x70] sm:$0xf]
  %v193 = vpack.c.bf16 %v181, %v178
  %v194 = vpack.c.bf16 %v182, %v179
  %v195 = vpack.c.bf16 %v183, %v180
  %v196 = vpack.c.bf16 %v187, %v184
  %v197 = vpack.c.bf16 %v188, %v185
  %v198 = vpack.c.bf16 %v189, %v186
  %v199 = vpack.c.bf16 %v190, %v190
  %v200 = vpack.c.bf16 %v191, %v191
  %v201 = vpack.c.bf16 %v192, %v192
  %vm202 = vcmask 293888
  %v204 = vsel %vm202, %v177, 0
  %vm206 = vcmask 1041408
  %v208 = vsel %vm206, %v199, 0
  %v211 = vsel %vm206, %v200, 0
  %v214 = vsel %vm206, %v201, 0
  %216 = vmatprep.subr.bf16.mxu0 %v194
  %217 = vmatpush1.bf16.msra.mxu0 %v193
  %218 = vmatprep.subr.bf16.mxu0 %v197
  %219 = vmatpush1.bf16.msra.mxu0 %v196
  %220 = vmatprep.subr.bf16.mxu0 %v211
  %221 = vmatpush1.bf16.msra.mxu0 %v208
  %222 = vmatprep.subr.bf16.mxu0 0
  %223 = vmatpush1.bf16.msra.mxu0 0
  %224 = vmatprep.subr.bf16.mxu0 0
  %225 = vmatpush1.bf16.msra.mxu0 0
  %226 = vmatprep.subr.bf16.mxu0 0
  %227 = vmatpush1.bf16.msra.mxu0 0
  %228 = vmatprep.subr.bf16.mxu0 0
  %229 = vmatpush1.bf16.msra.mxu0 0
  %230 = vmatprep.subr.bf16.mxu0 0
  %231 = vmatpush1.bf16.msra.mxu0 0
  %232 = vmatprep.subr.bf16.mxu0 0
  %233 = vmatpush1.bf16.msra.mxu0 0
  %234 = vmatprep.subr.bf16.mxu0 0
  %235 = vmatpush1.bf16.msra.mxu0 0
  %236 = vmatprep.subr.bf16.mxu0 0
  %237 = vmatpush1.bf16.msra.mxu0 0
  %238 = vmatprep.subr.bf16.mxu0 0
  %239 = vmatpush1.bf16.msra.mxu0 0
  %240 = vmatprep.subr.bf16.mxu0 0
  %241 = vmatpush1.bf16.msra.mxu0 0
  %242 = vmatprep.subr.bf16.mxu0 0
  %243 = vmatpush1.bf16.msra.mxu0 0
  %244 = vmatprep.subr.bf16.mxu0 0
  %245 = vmatpush1.bf16.msra.mxu0 0
  %246 = vmatprep.subr.bf16.mxu0 0
  %247 = vmatpush1.bf16.msra.mxu0 0
  %248 = vmatprep.mubr.bf16.mxu0 0
  %249 = vmatmul.mubr.bf16.gmra.mrb[0].mxu0 %v204
  %v250 = vpop.f32.mrb[0].mxu0
  %v251 = vadd.f32 0.0, %v250
  %v252 = vpop.f32.mrb[0].mxu0
  %v253 = vadd.f32 0.0, %v252
  %v254 = vpop.f32.mrb[0].mxu0
  %v255 = vpop.f32.mrb[0].mxu0
  %256 = vdwg.mxu0
  %257 = vmatprep.subr.bf16.mxu0 0
  %258 = vmatpush1.bf16.msra.mxu0 %v195
  %259 = vmatprep.subr.bf16.mxu0 0
  %260 = vmatpush1.bf16.msra.mxu0 %v198
  %261 = vmatprep.subr.bf16.mxu0 0
  %262 = vmatpush1.bf16.msra.mxu0 %v214
  %263 = vmatprep.subr.bf16.mxu0 0
  %264 = vmatpush1.bf16.msra.mxu0 0
  %265 = vmatprep.subr.bf16.mxu0 0
  %266 = vmatpush1.bf16.msra.mxu0 0
  %267 = vmatprep.subr.bf16.mxu0 0
  %268 = vmatpush1.bf16.msra.mxu0 0
  %269 = vmatprep.subr.bf16.mxu0 0
  %270 = vmatpush1.bf16.msra.mxu0 0
  %271 = vmatprep.subr.bf16.mxu0 0
  %272 = vmatpush1.bf16.msra.mxu0 0
  %273 = vmatprep.subr.bf16.mxu0 0
  %274 = vmatpush1.bf16.msra.mxu0 0
  %275 = vmatprep.subr.bf16.mxu0 0
  %276 = vmatpush1.bf16.msra.mxu0 0
  %277 = vmatprep.subr.bf16.mxu0 0
  %278 = vmatpush1.bf16.msra.mxu0 0
  %279 = vmatprep.subr.bf16.mxu0 0
  %280 = vmatpush1.bf16.msra.mxu0 0
  %281 = vmatprep.subr.bf16.mxu0 0
  %282 = vmatpush1.bf16.msra.mxu0 0
  %283 = vmatprep.subr.bf16.mxu0 0
  %284 = vmatpush1.bf16.msra.mxu0 0
  %285 = vmatprep.subr.bf16.mxu0 0
  %286 = vmatpush1.bf16.msra.mxu0 0
  %287 = vmatprep.subr.bf16.mxu0 0
  %288 = vmatpush1.bf16.msra.mxu0 0
  %289 = vmatprep.mubr.bf16.mxu0 0
  %290 = vmatmul.mubr.bf16.gmra.mrb[0].mxu0 %v204
  %v291 = vpop.f32.mrb[0].mxu0
  %v292 = vadd.f32 0.0, %v291
  %v293 = vpop.f32.mrb[0].mxu0
  %v294 = vpop.f32.mrb[0].mxu0
  %v295 = vpop.f32.mrb[0].mxu0
  %296 = vdwg.mxu0
  %298 = vset.pattern.permute.xlu0 0
  %299 = vperm.xlu0 %298, %v18
  %v300 = vpop.permute.xlu0 %299
  %v302 = vmul.f32 %v251, %v300
  %v303 = vmul.f32 %v253, %v300
  %v304 = vmul.f32 %v292, %v300
  %306 = vset.pattern.permute.xlu0 0
  %307 = vperm.xlu0 %306, %v19
  %v308 = vpop.permute.xlu0 %307
  %v310 = vadd.f32 %v302, %v308
  %v311 = vadd.f32 %v303, %v308
  %v312 = vadd.f32 %v304, %v308
  %313 = vst [vmem:[%s4] sm:$0xff] %v310
  %314 = vst [vmem:[%s4 + $0x8] sm:$0xff] %v311
  %315 = vst [vmem:[%s4 + $0x10] sm:$0xff] %v312
  %s316 = scalar_lea.vmem %s0, 8
  %v317 = vld [vmem:[%s316] sm:$0xff]
  %v318 = vunpack.c.l.bf16 %v317
  %v319 = vunpack.c.h.bf16 %v317
  %v322 = vcombine.high %v318, %v318
  %324 = vst [vmem:[#allocation2] sm:$0xf] %v318
  %325 = vst [vmem:[#allocation2 + $0x8] sm:$0xf] %v322
  %326 = vst [vmem:[#allocation2 + $0x10] sm:$0xf] %v319
  %v327 = vcombine.low %v318, %v318
  %v328 = vcombine.low %v319, %v319
  %329 = vrot.lane.b32.xlu0 %v327, 127
  %v330 = vpop.permute.xlu0 %329
  %331 = vrot.lane.b32.xlu0 %v318, 127
  %v332 = vpop.permute.xlu0 %331
  %333 = vrot.lane.b32.xlu0 %v328, 127
  %v334 = vpop.permute.xlu0 %333
  %335 = vrot.lane.b32.xlu0 %v319, 127
  %v336 = vpop.permute.xlu0 %335
  %v337 = vsel %vm40, %v330, %v332
  %v338 = vsel %vm40, %v332, %v334
  %v339 = vsel %vm40, %v334, %v336
  %343 = vst [vmem:[#allocation2] sm:$0xf0] %v337
  %344 = vst [vmem:[#allocation2 + $0x8] sm:$0xf0] %v338
  %345 = vst [vmem:[#allocation2 + $0x10] sm:$0xf0] %v339
  %v346 = vcombine.high %v319, %v319
  %347 = vrot.lane.b32.xlu0 %v318, 126
  %v348 = vpop.permute.xlu0 %347
  %349 = vrot.lane.b32.xlu0 %v322, 126
  %v350 = vpop.permute.xlu0 %349
  %351 = vrot.lane.b32.xlu0 %v319, 126
  %v352 = vpop.permute.xlu0 %351
  %353 = vrot.lane.b32.xlu0 %v346, 126
  %v354 = vpop.permute.xlu0 %353
  %v355 = vsel %vm59, %v348, %v350
  %v356 = vsel %vm59, %v350, %v352
  %v357 = vsel %vm59, %v352, %v354
  %361 = vst [vmem:[#allocation2 + $0x18] sm:$0xf] %v355
  %362 = vst [vmem:[#allocation2 + $0x20] sm:$0xf] %v356
  %363 = vst [vmem:[#allocation2 + $0x28] sm:$0xf] %v357
  %364 = vrot.lane.b32.xlu0 %v327, 110
  %v365 = vpop.permute.xlu0 %364
  %366 = vrot.lane.b32.xlu0 %v318, 110
  %v367 = vpop.permute.xlu0 %366
  %368 = vrot.lane.b32.xlu0 %v328, 110
  %v369 = vpop.permute.xlu0 %368
  %370 = vrot.lane.b32.xlu0 %v319, 110
  %v371 = vpop.permute.xlu0 %370
  %v372 = vsel %vm77, %v365, %v367
  %v373 = vsel %vm77, %v367, %v369
  %v374 = vsel %vm77, %v369, %v371
  %378 = vst [vmem:[#allocation2 + $0x18] sm:$0xf0] %v372
  %379 = vst [vmem:[#allocation2 + $0x20] sm:$0xf0] %v373
  %380 = vst [vmem:[#allocation2 + $0x28] sm:$0xf0] %v374
  %381 = vrot.lane.b32.xlu0 %v318, 109
  %v382 = vpop.permute.xlu0 %381
  %383 = vrot.lane.b32.xlu0 %v322, 109
  %v384 = vpop.permute.xlu0 %383
  %385 = vrot.lane.b32.xlu0 %v319, 109
  %v386 = vpop.permute.xlu0 %385
  %387 = vrot.lane.b32.xlu0 %v346, 109
  %v388 = vpop.permute.xlu0 %387
  %v389 = vsel %vm95, %v382, %v384
  %v390 = vsel %vm95, %v384, %v386
  %v391 = vsel %vm95, %v386, %v388
  %395 = vst [vmem:[#allocation2 + $0x30] sm:$0xf] %v389
  %396 = vst [vmem:[#allocation2 + $0x38] sm:$0xf] %v390
  %397 = vst [vmem:[#allocation2 + $0x40] sm:$0xf] %v391
  %398 = vrot.lane.b32.xlu0 %v327, 108
  %v399 = vpop.permute.xlu0 %398
  %400 = vrot.lane.b32.xlu0 %v318, 108
  %v401 = vpop.permute.xlu0 %400
  %402 = vrot.lane.b32.xlu0 %v328, 108
  %v403 = vpop.permute.xlu0 %402
  %404 = vrot.lane.b32.xlu0 %v319, 108
  %v405 = vpop.permute.xlu0 %404
  %v406 = vsel %vm113, %v399, %v401
  %v407 = vsel %vm113, %v401, %v403
  %v408 = vsel %vm113, %v403, %v405
  %412 = vst [vmem:[#allocation2 + $0x30] sm:$0xf0] %v406
  %413 = vst [vmem:[#allocation2 + $0x38] sm:$0xf0] %v407
  %414 = vst [vmem:[#allocation2 + $0x40] sm:$0xf0] %v408
  %415 = vrot.lane.b32.xlu0 %v318, 92
  %v416 = vpop.permute.xlu0 %415
  %417 = vrot.lane.b32.xlu0 %v322, 92
  %v418 = vpop.permute.xlu0 %417
  %419 = vrot.lane.b32.xlu0 %v319, 92
  %v420 = vpop.permute.xlu0 %419
  %421 = vrot.lane.b32.xlu0 %v346, 92
  %v422 = vpop.permute.xlu0 %421
  %v423 = vsel %vm131, %v416, %v418
  %v424 = vsel %vm131, %v418, %v420
  %v425 = vsel %vm131, %v420, %v422
  %429 = vst [vmem:[#allocation2 + $0x48] sm:$0xf] %v423
  %430 = vst [vmem:[#allocation2 + $0x50] sm:$0xf] %v424
  %431 = vst [vmem:[#allocation2 + $0x58] sm:$0xf] %v425
  %432 = vrot.lane.b32.xlu0 %v327, 91
  %v433 = vpop.permute.xlu0 %432
  %434 = vrot.lane.b32.xlu0 %v318, 91
  %v435 = vpop.permute.xlu0 %434
  %436 = vrot.lane.b32.xlu0 %v328, 91
  %v437 = vpop.permute.xlu0 %436
  %438 = vrot.lane.b32.xlu0 %v319, 91
  %v439 = vpop.permute.xlu0 %438
  %v440 = vsel %vm149, %v433, %v435
  %v441 = vsel %vm149, %v435, %v437
  %v442 = vsel %vm149, %v437, %v439
  %446 = vst [vmem:[#allocation2 + $0x48] sm:$0xf0] %v440
  %447 = vst [vmem:[#allocation2 + $0x50] sm:$0xf0] %v441
  %448 = vst [vmem:[#allocation2 + $0x58] sm:$0xf0] %v442
  %449 = vrot.lane.b32.xlu0 %v318, 90
  %v450 = vpop.permute.xlu0 %449
  %451 = vrot.lane.b32.xlu0 %v322, 90
  %v452 = vpop.permute.xlu0 %451
  %453 = vrot.lane.b32.xlu0 %v319, 90
  %v454 = vpop.permute.xlu0 %453
  %455 = vrot.lane.b32.xlu0 %v346, 90
  %v456 = vpop.permute.xlu0 %455
  %v457 = vsel %vm167, %v450, %v452
  %v458 = vsel %vm167, %v452, %v454
  %v459 = vsel %vm167, %v454, %v456
  %463 = vst [vmem:[#allocation2 + $0x60] sm:$0xf] %v457
  %464 = vst [vmem:[#allocation2 + $0x68] sm:$0xf] %v458
  %465 = vst [vmem:[#allocation2 + $0x70] sm:$0xf] %v459
  %v466 = vld [vmem:[%s1] sm:$0xf]
  %v467 = vld [vmem:[#allocation2] sm:$0xff]
  %v468 = vld [vmem:[#allocation2 + $0x8] sm:$0xff]
  %v469 = vld [vmem:[#allocation2 + $0x10] sm:$0xff]
  %v470 = vld [vmem:[#allocation2 + $0x18] sm:$0xff]
  %v471 = vld [vmem:[#allocation2 + $0x20] sm:$0xff]
  %v472 = vld [vmem:[#allocation2 + $0x28] sm:$0xff]
  %v473 = vld [vmem:[#allocation2 + $0x30] sm:$0xff]
  %v474 = vld [vmem:[#allocation2 + $0x38] sm:$0xff]
  %v475 = vld [vmem:[#allocation2 + $0x40] sm:$0xff]
  %v476 = vld [vmem:[#allocation2 + $0x48] sm:$0xff]
  %v477 = vld [vmem:[#allocation2 + $0x50] sm:$0xff]
  %v478 = vld [vmem:[#allocation2 + $0x58] sm:$0xff]
  %v479 = vld [vmem:[#allocation2 + $0x60] sm:$0xf]
  %v480 = vld [vmem:[#allocation2 + $0x68] sm:$0xf]
  %v481 = vld [vmem:[#allocation2 + $0x70] sm:$0xf]
  %v482 = vpack.c.bf16 %v470, %v467
  %v483 = vpack.c.bf16 %v471, %v468
  %v484 = vpack.c.bf16 %v472, %v469
  %v485 = vpack.c.bf16 %v476, %v473
  %v486 = vpack.c.bf16 %v477, %v474
  %v487 = vpack.c.bf16 %v478, %v475
  %v488 = vpack.c.bf16 %v479, %v479
  %v489 = vpack.c.bf16 %v480, %v480
  %v490 = vpack.c.bf16 %v481, %v481
  %v492 = vsel %vm202, %v466, 0
  %v495 = vsel %vm206, %v488, 0
  %v498 = vsel %vm206, %v489, 0
  %v501 = vsel %vm206, %v490, 0
  %503 = vmatprep.subr.bf16.mxu0 %v483
  %504 = vmatpush1.bf16.msra.mxu0 %v482
  %505 = vmatprep.subr.bf16.mxu0 %v486
  %506 = vmatpush1.bf16.msra.mxu0 %v485
  %507 = vmatprep.subr.bf16.mxu0 %v498
  %508 = vmatpush1.bf16.msra.mxu0 %v495
  %509 = vmatprep.subr.bf16.mxu0 0
  %510 = vmatpush1.bf16.msra.mxu0 0
  %511 = vmatprep.subr.bf16.mxu0 0
  %512 = vmatpush1.bf16.msra.mxu0 0
  %513 = vmatprep.subr.bf16.mxu0 0
  %514 = vmatpush1.bf16.msra.mxu0 0
  %515 = vmatprep.subr.bf16.mxu0 0
  %516 = vmatpush1.bf16.msra.mxu0 0
  %517 = vmatprep.subr.bf16.mxu0 0
  %518 = vmatpush1.bf16.msra.mxu0 0
  %519 = vmatprep.subr.bf16.mxu0 0
  %520 = vmatpush1.bf16.msra.mxu0 0
  %521 = vmatprep.subr.bf16.mxu0 0
  %522 = vmatpush1.bf16.msra.mxu0 0
  %523 = vmatprep.subr.bf16.mxu0 0
  %524 = vmatpush1.bf16.msra.mxu0 0
  %525 = vmatprep.subr.bf16.mxu0 0
  %526 = vmatpush1.bf16.msra.mxu0 0
  %527 = vmatprep.subr.bf16.mxu0 0
  %528 = vmatpush1.bf16.msra.mxu0 0
  %529 = vmatprep.subr.bf16.mxu0 0
  %530 = vmatpush1.bf16.msra.mxu0 0
  %531 = vmatprep.subr.bf16.mxu0 0
  %532 = vmatpush1.bf16.msra.mxu0 0
  %533 = vmatprep.subr.bf16.mxu0 0
  %534 = vmatpush1.bf16.msra.mxu0 0
  %535 = vmatprep.mubr.bf16.mxu0 0
  %536 = vmatmul.mubr.bf16.gmra.mrb[0].mxu0 %v492
  %v537 = vpop.f32.mrb[0].mxu0
  %v538 = vadd.f32 0.0, %v537
  %v539 = vpop.f32.mrb[0].mxu0
  %v540 = vadd.f32 0.0, %v539
  %v541 = vpop.f32.mrb[0].mxu0
  %v542 = vpop.f32.mrb[0].mxu0
  %543 = vdwg.mxu0
  %544 = vmatprep.subr.bf16.mxu0 0
  %545 = vmatpush1.bf16.msra.mxu0 %v484
  %546 = vmatprep.subr.bf16.mxu0 0
  %547 = vmatpush1.bf16.msra.mxu0 %v487
  %548 = vmatprep.subr.bf16.mxu0 0
  %549 = vmatpush1.bf16.msra.mxu0 %v501
  %550 = vmatprep.subr.bf16.mxu0 0
  %551 = vmatpush1.bf16.msra.mxu0 0
  %552 = vmatprep.subr.bf16.mxu0 0
  %553 = vmatpush1.bf16.msra.mxu0 0
  %554 = vmatprep.subr.bf16.mxu0 0
  %555 = vmatpush1.bf16.msra.mxu0 0
  %556 = vmatprep.subr.bf16.mxu0 0
  %557 = vmatpush1.bf16.msra.mxu0 0
  %558 = vmatprep.subr.bf16.mxu0 0
  %559 = vmatpush1.bf16.msra.mxu0 0
  %560 = vmatprep.subr.bf16.mxu0 0
  %561 = vmatpush1.bf16.msra.mxu0 0
  %562 = vmatprep.subr.bf16.mxu0 0
  %563 = vmatpush1.bf16.msra.mxu0 0
  %564 = vmatprep.subr.bf16.mxu0 0
  %565 = vmatpush1.bf16.msra.mxu0 0
  %566 = vmatprep.subr.bf16.mxu0 0
  %567 = vmatpush1.bf16.msra.mxu0 0
  %568 = vmatprep.subr.bf16.mxu0 0
  %569 = vmatpush1.bf16.msra.mxu0 0
  %570 = vmatprep.subr.bf16.mxu0 0
  %571 = vmatpush1.bf16.msra.mxu0 0
  %572 = vmatprep.subr.bf16.mxu0 0
  %573 = vmatpush1.bf16.msra.mxu0 0
  %574 = vmatprep.subr.bf16.mxu0 0
  %575 = vmatpush1.bf16.msra.mxu0 0
  %576 = vmatprep.mubr.bf16.mxu0 0
  %577 = vmatmul.mubr.bf16.gmra.mrb[0].mxu0 %v492
  %v578 = vpop.f32.mrb[0].mxu0
  %v579 = vadd.f32 0.0, %v578
  %v580 = vpop.f32.mrb[0].mxu0
  %v581 = vpop.f32.mrb[0].mxu0
  %v582 = vpop.f32.mrb[0].mxu0
  %583 = vdwg.mxu0
  %v584 = vmul.f32 %v538, %v300
  %v585 = vmul.f32 %v540, %v300
  %v586 = vmul.f32 %v579, %v300
  %v587 = vadd.f32 %v584, %v308
  %v588 = vadd.f32 %v585, %v308
  %v589 = vadd.f32 %v586, %v308
  %s590 = scalar_lea.vmem %s4, 24
  %591 = vst [vmem:[%s590] sm:$0xff] %v587
  %592 = vst [vmem:[%s590 + $0x8] sm:$0xff] %v588
  %593 = vst [vmem:[%s590 + $0x10] sm:$0xff] %v589
  // Predicated region
  $region18: #{identical_block_forward.3} parent=0 // pred_check
    _
  $region19: #{identical_block_forward.3} parent=0 // pred_check_branch
    %595 = sbr.rel (0) target = $region21
  $region20: #{identical_block_forward.3} parent=0 // pred_region
    _
  $region21: #{identical_block_forward.3} parent=0 // pred_fallthru
    _
  // Predicated region
  $region22: #{identical_block_forward.3} parent=0 // pred_check
    _
  $region23: #{identical_block_forward.3} parent=0 // pred_check_branch
    %597 = sbr.rel (0) target = $region25
  $region24: #{identical_block_forward.3} parent=0 // pred_region
    _
  $region25: #{identical_block_forward.3} parent=0 // pred_fallthru
    _

// kernel: identical_block_forward.2
$region0: #{identical_block_forward.2}
  #allocation0 [shape = 'u32[]', space=smem, size = 0x4, offset = 0x4, fixed_abs, tag = 'smem constant byte address 0x4 - core index']
  #allocation1 [shape = 'u32[144,128]{1,0:T(1,128)}', space=vmem, size = 0x12000, scoped, tag = 'internal scratch']
  #allocation2 [shape = 'f32[36,384]{1,0:T(8,128)}', space=vmem, size = 0xf000, scoped, tag = 'scratch operand']
  %s0 = inlined_call_operand.vmem [shape: bf16[2,4,422], index: 0, kind: input, shape index: {}]
  %s1 = inlined_call_operand.vmem [shape: bf16[8,36], index: 1, kind: input, shape index: {}]
  %s2 = inlined_call_operand.vmem [shape: f32[1,384], index: 2, kind: input, shape index: {}]
  %s3 = inlined_call_operand.vmem [shape: f32[2,8,2], index: 3, kind: output, shape index: {}]
  %s4 = sld [smem:[#allocation0]]
  $region22: #{identical_block_forward.2} parent=0
    _
  %s6 = ssub.s32 1, %s4
  %s7 = scalar_select 0, %s6, %s4
  // Predicated region
  $region2: #{identical_block_forward.2} parent=0 // pred_check
    _
  $region3: #{identical_block_forward.2} parent=0 // pred_check_branch
    %9 = sbr.rel (0) target = $region5
  $region4: #{identical_block_forward.2} parent=0 // pred_region
    _
  $region5: #{identical_block_forward.2} parent=0 // pred_fallthru
    _
  // Predicated region
  $region6: #{identical_block_forward.2} parent=0 // pred_check
    _
  $region7: #{identical_block_forward.2} parent=0 // pred_check_branch
    %11 = sbr.rel (0) target = $region9
  $region8: #{identical_block_forward.2} parent=0 // pred_region
    _
  $region9: #{identical_block_forward.2} parent=0 // pred_fallthru
    _
  // Predicated region
  $region10: #{identical_block_forward.2} parent=0 // pred_check
    _
  $region11: #{identical_block_forward.2} parent=0 // pred_check_branch
    %13 = sbr.rel (0) target = $region13
  $region12: #{identical_block_forward.2} parent=0 // pred_region
    _
  $region13: #{identical_block_forward.2} parent=0 // pred_fallthru
    _
  %v15 = vld [vmem:[%s2] sm:$0x7]
  %v16 = vld [vmem:[%s0] sm:$0xff]
  %v17 = vunpack.c.l.bf16 %v16
  %v18 = vunpack.c.h.bf16 %v16
  %v21 = vcombine.high %v17, %v17
  %23 = vst [vmem:[#allocation2] sm:$0xf] %v17
  %24 = vst [vmem:[#allocation2 + $0x8] sm:$0xf] %v21
  %25 = vst [vmem:[#allocation2 + $0x10] sm:$0xf] %v18
  %v26 = vcombine.low %v17, %v17
  %v27 = vcombine.low %v18, %v18
  %28 = vrot.lane.b32.xlu0 %v26, 127
  %v29 = vpop.permute.xlu0 %28
  %30 = vrot.lane.b32.xlu0 %v17, 127
  %v31 = vpop.permute.xlu0 %30
  %32 = vrot.lane.b32.xlu0 %v27, 127
  %v33 = vpop.permute.xlu0 %32
  %34 = vrot.lane.b32.xlu0 %v18, 127
  %v35 = vpop.permute.xlu0 %34
  %vm36 = vcmask 1039360
  %v37 = vsel %vm36, %v29, %v31
  %v38 = vsel %vm36, %v31, %v33
  %v39 = vsel %vm36, %v33, %v35
  %43 = vst [vmem:[#allocation2] sm:$0xf0] %v37
  %44 = vst [vmem:[#allocation2 + $0x8] sm:$0xf0] %v38
  %45 = vst [vmem:[#allocation2 + $0x10] sm:$0xf0] %v39
  %v46 = vcombine.high %v18, %v18
  %47 = vrot.lane.b32.xlu0 %v17, 126
  %v48 = vpop.permute.xlu0 %47
  %49 = vrot.lane.b32.xlu0 %v21, 126
  %v50 = vpop.permute.xlu0 %49
  %51 = vrot.lane.b32.xlu0 %v18, 126
  %v52 = vpop.permute.xlu0 %51
  %53 = vrot.lane.b32.xlu0 %v46, 126
  %v54 = vpop.permute.xlu0 %53
  %vm55 = vcmask 1031168
  %v56 = vsel %vm55, %v48, %v50
  %v57 = vsel %vm55, %v50, %v52
  %v58 = vsel %vm55, %v52, %v54
  %62 = vst [vmem:[#allocation2 + $0x18] sm:$0xf] %v56
  %63 = vst [vmem:[#allocation2 + $0x20] sm:$0xf] %v57
  %64 = vst [vmem:[#allocation2 + $0x28] sm:$0xf] %v58
  %65 = vrot.lane.b32.xlu0 %v26, 110
  %v66 = vpop.permute.xlu0 %65
  %67 = vrot.lane.b32.xlu0 %v17, 110
  %v68 = vpop.permute.xlu0 %67
  %69 = vrot.lane.b32.xlu0 %v27, 110
  %v70 = vpop.permute.xlu0 %69
  %71 = vrot.lane.b32.xlu0 %v18, 110
  %v72 = vpop.permute.xlu0 %71
  %vm73 = vcmask 900096
  %v74 = vsel %vm73, %v66, %v68
  %v75 = vsel %vm73, %v68, %v70
  %v76 = vsel %vm73, %v70, %v72
  %80 = vst [vmem:[#allocation2 + $0x18] sm:$0xf0] %v74
  %81 = vst [vmem:[#allocation2 + $0x20] sm:$0xf0] %v75
  %82 = vst [vmem:[#allocation2 + $0x28] sm:$0xf0] %v76
  %83 = vrot.lane.b32.xlu0 %v17, 109
  %v84 = vpop.permute.xlu0 %83
  %85 = vrot.lane.b32.xlu0 %v21, 109
  %v86 = vpop.permute.xlu0 %85
  %87 = vrot.lane.b32.xlu0 %v18, 109
  %v88 = vpop.permute.xlu0 %87
  %89 = vrot.lane.b32.xlu0 %v46, 109
  %v90 = vpop.permute.xlu0 %89
  %vm91 = vcmask 891904
  %v92 = vsel %vm91, %v84, %v86
  %v93 = vsel %vm91, %v86, %v88
  %v94 = vsel %vm91, %v88, %v90
  %98 = vst [vmem:[#allocation2 + $0x30] sm:$0xf] %v92
  %99 = vst [vmem:[#allocation2 + $0x38] sm:$0xf] %v93
  %100 = vst [vmem:[#allocation2 + $0x40] sm:$0xf] %v94
  %101 = vrot.lane.b32.xlu0 %v26, 108
  %v102 = vpop.permute.xlu0 %101
  %103 = vrot.lane.b32.xlu0 %v17, 108
  %v104 = vpop.permute.xlu0 %103
  %105 = vrot.lane.b32.xlu0 %v27, 108
  %v106 = vpop.permute.xlu0 %105
  %107 = vrot.lane.b32.xlu0 %v18, 108
  %v108 = vpop.permute.xlu0 %107
  %vm109 = vcmask 883712
  %v110 = vsel %vm109, %v102, %v104
  %v111 = vsel %vm109, %v104, %v106
  %v112 = vsel %vm109, %v106, %v108
  %116 = vst [vmem:[#allocation2 + $0x30] sm:$0xf0] %v110
  %117 = vst [vmem:[#allocation2 + $0x38] sm:$0xf0] %v111
  %118 = vst [vmem:[#allocation2 + $0x40] sm:$0xf0] %v112
  %119 = vrot.lane.b32.xlu0 %v17, 92
  %v120 = vpop.permute.xlu0 %119
  %121 = vrot.lane.b32.xlu0 %v21, 92
  %v122 = vpop.permute.xlu0 %121
  %123 = vrot.lane.b32.xlu0 %v18, 92
  %v124 = vpop.permute.xlu0 %123
  %125 = vrot.lane.b32.xlu0 %v46, 92
  %v126 = vpop.permute.xlu0 %125
  %vm127 = vcmask 752640
  %v128 = vsel %vm127, %v120, %v122
  %v129 = vsel %vm127, %v122, %v124
  %v130 = vsel %vm127, %v124, %v126
  %134 = vst [vmem:[#allocation2 + $0x48] sm:$0xf] %v128
  %135 = vst [vmem:[#allocation2 + $0x50] sm:$0xf] %v129
  %136 = vst [vmem:[#allocation2 + $0x58] sm:$0xf] %v130
  %137 = vrot.lane.b32.xlu0 %v26, 91
  %v138 = vpop.permute.xlu0 %137
  %139 = vrot.lane.b32.xlu0 %v17, 91
  %v140 = vpop.permute.xlu0 %139
  %141 = vrot.lane.b32.xlu0 %v27, 91
  %v142 = vpop.permute.xlu0 %141
  %143 = vrot.lane.b32.xlu0 %v18, 91
  %v144 = vpop.permute.xlu0 %143
  %vm145 = vcmask 744448
  %v146 = vsel %vm145, %v138, %v140
  %v147 = vsel %vm145, %v140, %v142
  %v148 = vsel %vm145, %v142, %v144
  %152 = vst [vmem:[#allocation2 + $0x48] sm:$0xf0] %v146
  %153 = vst [vmem:[#allocation2 + $0x50] sm:$0xf0] %v147
  %154 = vst [vmem:[#allocation2 + $0x58] sm:$0xf0] %v148
  %155 = vrot.lane.b32.xlu0 %v17, 90
  %v156 = vpop.permute.xlu0 %155
  %157 = vrot.lane.b32.xlu0 %v21, 90
  %v158 = vpop.permute.xlu0 %157
  %159 = vrot.lane.b32.xlu0 %v18, 90
  %v160 = vpop.permute.xlu0 %159
  %161 = vrot.lane.b32.xlu0 %v46, 90
  %v162 = vpop.permute.xlu0 %161
  %vm163 = vcmask 736256
  %v164 = vsel %vm163, %v156, %v158
  %v165 = vsel %vm163, %v158, %v160
  %v166 = vsel %vm163, %v160, %v162
  %170 = vst [vmem:[#allocation2 + $0x60] sm:$0xf] %v164
  %171 = vst [vmem:[#allocation2 + $0x68] sm:$0xf] %v165
  %172 = vst [vmem:[#allocation2 + $0x70] sm:$0xf] %v166
  %v173 = vld [vmem:[%s1] sm:$0xf]
  %v174 = vld [vmem:[#allocation2] sm:$0xff]
  %v175 = vld [vmem:[#allocation2 + $0x8] sm:$0xff]
  %v176 = vld [vmem:[#allocation2 + $0x10] sm:$0xff]
  %v177 = vld [vmem:[#allocation2 + $0x18] sm:$0xff]
  %v178 = vld [vmem:[#allocation2 + $0x20] sm:$0xff]
  %v179 = vld [vmem:[#allocation2 + $0x28] sm:$0xff]
  %v180 = vld [vmem:[#allocation2 + $0x30] sm:$0xff]
  %v181 = vld [vmem:[#allocation2 + $0x38] sm:$0xff]
  %v182 = vld [vmem:[#allocation2 + $0x40] sm:$0xff]
  %v183 = vld [vmem:[#allocation2 + $0x48] sm:$0xff]
  %v184 = vld [vmem:[#allocation2 + $0x50] sm:$0xff]
  %v185 = vld [vmem:[#allocation2 + $0x58] sm:$0xff]
  %v186 = vld [vmem:[#allocation2 + $0x60] sm:$0xf]
  %v187 = vld [vmem:[#allocation2 + $0x68] sm:$0xf]
  %v188 = vld [vmem:[#allocation2 + $0x70] sm:$0xf]
  %v189 = vpack.c.bf16 %v177, %v174
  %v190 = vpack.c.bf16 %v178, %v175
  %v191 = vpack.c.bf16 %v179, %v176
  %v192 = vpack.c.bf16 %v183, %v180
  %v193 = vpack.c.bf16 %v184, %v181
  %v194 = vpack.c.bf16 %v185, %v182
  %v195 = vpack.c.bf16 %v186, %v186
  %v196 = vpack.c.bf16 %v187, %v187
  %v197 = vpack.c.bf16 %v188, %v188
  %vm198 = vcmask 293888
  %v200 = vsel %vm198, %v173, 0
  %vm202 = vcmask 1041408
  %v204 = vsel %vm202, %v195, 0
  %v207 = vsel %vm202, %v196, 0
  %v210 = vsel %vm202, %v197, 0
  %212 = vmatprep.subr.bf16.mxu0 %v190
  %213 = vmatpush1.bf16.msra.mxu0 %v189
  %214 = vmatprep.subr.bf16.mxu0 %v193
  %215 = vmatpush1.bf16.msra.mxu0 %v192
  %216 = vmatprep.subr.bf16.mxu0 %v207
  %217 = vmatpush1.bf16.msra.mxu0 %v204
  %218 = vmatprep.subr.bf16.mxu0 0
  %219 = vmatpush1.bf16.msra.mxu0 0
  %220 = vmatprep.subr.bf16.mxu0 0
  %221 = vmatpush1.bf16.msra.mxu0 0
  %222 = vmatprep.subr.bf16.mxu0 0
  %223 = vmatpush1.bf16.msra.mxu0 0
  %224 = vmatprep.subr.bf16.mxu0 0
  %225 = vmatpush1.bf16.msra.mxu0 0
  %226 = vmatprep.subr.bf16.mxu0 0
  %227 = vmatpush1.bf16.msra.mxu0 0
  %228 = vmatprep.subr.bf16.mxu0 0
  %229 = vmatpush1.bf16.msra.mxu0 0
  %230 = vmatprep.subr.bf16.mxu0 0
  %231 = vmatpush1.bf16.msra.mxu0 0
  %232 = vmatprep.subr.bf16.mxu0 0
  %233 = vmatpush1.bf16.msra.mxu0 0
  %234 = vmatprep.subr.bf16.mxu0 0
  %235 = vmatpush1.bf16.msra.mxu0 0
  %236 = vmatprep.subr.bf16.mxu0 0
  %237 = vmatpush1.bf16.msra.mxu0 0
  %238 = vmatprep.subr.bf16.mxu0 0
  %239 = vmatpush1.bf16.msra.mxu0 0
  %240 = vmatprep.subr.bf16.mxu0 0
  %241 = vmatpush1.bf16.msra.mxu0 0
  %242 = vmatprep.subr.bf16.mxu0 0
  %243 = vmatpush1.bf16.msra.mxu0 0
  %244 = vmatprep.mubr.bf16.mxu0 0
  %245 = vmatmul.mubr.bf16.gmra.mrb[0].mxu0 %v200
  %v246 = vpop.f32.mrb[0].mxu0
  %v247 = vadd.f32 0.0, %v246
  %v248 = vpop.f32.mrb[0].mxu0
  %v249 = vadd.f32 0.0, %v248
  %v250 = vpop.f32.mrb[0].mxu0
  %v251 = vpop.f32.mrb[0].mxu0
  %252 = vdwg.mxu0
  %253 = vmatprep.subr.bf16.mxu0 0
  %254 = vmatpush1.bf16.msra.mxu0 %v191
  %255 = vmatprep.subr.bf16.mxu0 0
  %256 = vmatpush1.bf16.msra.mxu0 %v194
  %257 = vmatprep.subr.bf16.mxu0 0
  %258 = vmatpush1.bf16.msra.mxu0 %v210
  %259 = vmatprep.subr.bf16.mxu0 0
  %260 = vmatpush1.bf16.msra.mxu0 0
  %261 = vmatprep.subr.bf16.mxu0 0
  %262 = vmatpush1.bf16.msra.mxu0 0
  %263 = vmatprep.subr.bf16.mxu0 0
  %264 = vmatpush1.bf16.msra.mxu0 0
  %265 = vmatprep.subr.bf16.mxu0 0
  %266 = vmatpush1.bf16.msra.mxu0 0
  %267 = vmatprep.subr.bf16.mxu0 0
  %268 = vmatpush1.bf16.msra.mxu0 0
  %269 = vmatprep.subr.bf16.mxu0 0
  %270 = vmatpush1.bf16.msra.mxu0 0
  %271 = vmatprep.subr.bf16.mxu0 0
  %272 = vmatpush1.bf16.msra.mxu0 0
  %273 = vmatprep.subr.bf16.mxu0 0
  %274 = vmatpush1.bf16.msra.mxu0 0
  %275 = vmatprep.subr.bf16.mxu0 0
  %276 = vmatpush1.bf16.msra.mxu0 0
  %277 = vmatprep.subr.bf16.mxu0 0
  %278 = vmatpush1.bf16.msra.mxu0 0
  %279 = vmatprep.subr.bf16.mxu0 0
  %280 = vmatpush1.bf16.msra.mxu0 0
  %281 = vmatprep.subr.bf16.mxu0 0
  %282 = vmatpush1.bf16.msra.mxu0 0
  %283 = vmatprep.subr.bf16.mxu0 0
  %284 = vmatpush1.bf16.msra.mxu0 0
  %285 = vmatprep.mubr.bf16.mxu0 0
  %286 = vmatmul.mubr.bf16.gmra.mrb[0].mxu0 %v200
  %v287 = vpop.f32.mrb[0].mxu0
  %v288 = vadd.f32 0.0, %v287
  %v289 = vpop.f32.mrb[0].mxu0
  %v290 = vpop.f32.mrb[0].mxu0
  %v291 = vpop.f32.mrb[0].mxu0
  %292 = vdwg.mxu0
  %v294 = vlaneseq
  %v295 = vshrl.u32 %v294, 7
  %v296 = vsub.s32 0, %v295
  %v297 = vrot.slane %v15, %v296
  %v298 = vlaneseq
  %v299 = vshrl.u32 %v298, 7
  %v300 = vsub.s32 1, %v299
  %v301 = vrot.slane %v15, %v300
  %v302 = vlaneseq
  %v303 = vshrl.u32 %v302, 7
  %v304 = vsub.s32 2, %v303
  %v305 = vrot.slane %v15, %v304
  %v309 = vmul.f32 %v247, %v297
  %v310 = vmul.f32 %v249, %v301
  %v311 = vmul.f32 %v288, %v305
  %v312 = vadd.f32 %v309, %v310
  %v313 = vadd.f32 %v312, %v311
  %314 = vadd.xlane.f32.xlu0 %v313
  %v315 = vpop.xlane.xlu0 %314
  %v316 = vmul.f32 %v315, 0.00390625
  %v317 = vsub.f32 %v247, %v316
  %v318 = vsub.f32 %v249, %v316
  %v319 = vsub.f32 %v288, %v316
  %v320 = vmul.f32 %v317, %v297
  %v321 = vmul.f32 %v318, %v301
  %v322 = vmul.f32 %v319, %v305
  %vm323 = vcmask 7168
  %324 = vst.msk [vmem:[%s3] sm:$0xff] %vm323, %v315
  %v325 = vmul.f32 %v320, %v320
  %v326 = vmul.f32 %v321, %v321
  %v327 = vmul.f32 %v322, %v322
  %v328 = vadd.f32 %v325, %v326
  %v329 = vadd.f32 %v328, %v327
  %330 = vadd.xlane.f32.xlu0 %v329
  %v331 = vpop.xlane.xlu0 %330
  %vm332 = vcmask 15368
  %333 = vst.msk [vmem:[%s3] sm:$0xff] %vm332, %v331
  %s334 = scalar_lea.vmem %s0, 8
  %v335 = vld [vmem:[%s334] sm:$0xff]
  %v336 = vunpack.c.l.bf16 %v335
  %v337 = vunpack.c.h.bf16 %v335
  %v340 = vcombine.high %v336, %v336
  %342 = vst [vmem:[#allocation2] sm:$0xf] %v336
  %343 = vst [vmem:[#allocation2 + $0x8] sm:$0xf] %v340
  %344 = vst [vmem:[#allocation2 + $0x10] sm:$0xf] %v337
  %v345 = vcombine.low %v336, %v336
  %v346 = vcombine.low %v337, %v337
  %347 = vrot.lane.b32.xlu0 %v345, 127
  %v348 = vpop.permute.xlu0 %347
  %349 = vrot.lane.b32.xlu0 %v336, 127
  %v350 = vpop.permute.xlu0 %349
  %351 = vrot.lane.b32.xlu0 %v346, 127
  %v352 = vpop.permute.xlu0 %351
  %353 = vrot.lane.b32.xlu0 %v337, 127
  %v354 = vpop.permute.xlu0 %353
  %v355 = vsel %vm36, %v348, %v350
  %v356 = vsel %vm36, %v350, %v352
  %v357 = vsel %vm36, %v352, %v354
  %361 = vst [vmem:[#allocation2] sm:$0xf0] %v355
  %362 = vst [vmem:[#allocation2 + $0x8] sm:$0xf0] %v356
  %363 = vst [vmem:[#allocation2 + $0x10] sm:$0xf0] %v357
  %v364 = vcombine.high %v337, %v337
  %365 = vrot.lane.b32.xlu0 %v336, 126
  %v366 = vpop.permute.xlu0 %365
  %367 = vrot.lane.b32.xlu0 %v340, 126
  %v368 = vpop.permute.xlu0 %367
  %369 = vrot.lane.b32.xlu0 %v337, 126
  %v370 = vpop.permute.xlu0 %369
  %371 = vrot.lane.b32.xlu0 %v364, 126
  %v372 = vpop.permute.xlu0 %371
  %v373 = vsel %vm55, %v366, %v368
  %v374 = vsel %vm55, %v368, %v370
  %v375 = vsel %vm55, %v370, %v372
  %379 = vst [vmem:[#allocation2 + $0x18] sm:$0xf] %v373
  %380 = vst [vmem:[#allocation2 + $0x20] sm:$0xf] %v374
  %381 = vst [vmem:[#allocation2 + $0x28] sm:$0xf] %v375
  %382 = vrot.lane.b32.xlu0 %v345, 110
  %v383 = vpop.permute.xlu0 %382
  %384 = vrot.lane.b32.xlu0 %v336, 110
  %v385 = vpop.permute.xlu0 %384
  %386 = vrot.lane.b32.xlu0 %v346, 110
  %v387 = vpop.permute.xlu0 %386
  %388 = vrot.lane.b32.xlu0 %v337, 110
  %v389 = vpop.permute.xlu0 %388
  %v390 = vsel %vm73, %v383, %v385
  %v391 = vsel %vm73, %v385, %v387
  %v392 = vsel %vm73, %v387, %v389
  %396 = vst [vmem:[#allocation2 + $0x18] sm:$0xf0] %v390
  %397 = vst [vmem:[#allocation2 + $0x20] sm:$0xf0] %v391
  %398 = vst [vmem:[#allocation2 + $0x28] sm:$0xf0] %v392
  %399 = vrot.lane.b32.xlu0 %v336, 109
  %v400 = vpop.permute.xlu0 %399
  %401 = vrot.lane.b32.xlu0 %v340, 109
  %v402 = vpop.permute.xlu0 %401
  %403 = vrot.lane.b32.xlu0 %v337, 109
  %v404 = vpop.permute.xlu0 %403
  %405 = vrot.lane.b32.xlu0 %v364, 109
  %v406 = vpop.permute.xlu0 %405
  %v407 = vsel %vm91, %v400, %v402
  %v408 = vsel %vm91, %v402, %v404
  %v409 = vsel %vm91, %v404, %v406
  %413 = vst [vmem:[#allocation2 + $0x30] sm:$0xf] %v407
  %414 = vst [vmem:[#allocation2 + $0x38] sm:$0xf] %v408
  %415 = vst [vmem:[#allocation2 + $0x40] sm:$0xf] %v409
  %416 = vrot.lane.b32.xlu0 %v345, 108
  %v417 = vpop.permute.xlu0 %416
  %418 = vrot.lane.b32.xlu0 %v336, 108
  %v419 = vpop.permute.xlu0 %418
  %420 = vrot.lane.b32.xlu0 %v346, 108
  %v421 = vpop.permute.xlu0 %420
  %422 = vrot.lane.b32.xlu0 %v337, 108
  %v423 = vpop.permute.xlu0 %422
  %v424 = vsel %vm109, %v417, %v419
  %v425 = vsel %vm109, %v419, %v421
  %v426 = vsel %vm109, %v421, %v423
  %430 = vst [vmem:[#allocation2 + $0x30] sm:$0xf0] %v424
  %431 = vst [vmem:[#allocation2 + $0x38] sm:$0xf0] %v425
  %432 = vst [vmem:[#allocation2 + $0x40] sm:$0xf0] %v426
  %433 = vrot.lane.b32.xlu0 %v336, 92
  %v434 = vpop.permute.xlu0 %433
  %435 = vrot.lane.b32.xlu0 %v340, 92
  %v436 = vpop.permute.xlu0 %435
  %437 = vrot.lane.b32.xlu0 %v337, 92
  %v438 = vpop.permute.xlu0 %437
  %439 = vrot.lane.b32.xlu0 %v364, 92
  %v440 = vpop.permute.xlu0 %439
  %v441 = vsel %vm127, %v434, %v436
  %v442 = vsel %vm127, %v436, %v438
  %v443 = vsel %vm127, %v438, %v440
  %447 = vst [vmem:[#allocation2 + $0x48] sm:$0xf] %v441
  %448 = vst [vmem:[#allocation2 + $0x50] sm:$0xf] %v442
  %449 = vst [vmem:[#allocation2 + $0x58] sm:$0xf] %v443
  %450 = vrot.lane.b32.xlu0 %v345, 91
  %v451 = vpop.permute.xlu0 %450
  %452 = vrot.lane.b32.xlu0 %v336, 91
  %v453 = vpop.permute.xlu0 %452
  %454 = vrot.lane.b32.xlu0 %v346, 91
  %v455 = vpop.permute.xlu0 %454
  %456 = vrot.lane.b32.xlu0 %v337, 91
  %v457 = vpop.permute.xlu0 %456
  %v458 = vsel %vm145, %v451, %v453
  %v459 = vsel %vm145, %v453, %v455
  %v460 = vsel %vm145, %v455, %v457
  %464 = vst [vmem:[#allocation2 + $0x48] sm:$0xf0] %v458
  %465 = vst [vmem:[#allocation2 + $0x50] sm:$0xf0] %v459
  %466 = vst [vmem:[#allocation2 + $0x58] sm:$0xf0] %v460
  %467 = vrot.lane.b32.xlu0 %v336, 90
  %v468 = vpop.permute.xlu0 %467
  %469 = vrot.lane.b32.xlu0 %v340, 90
  %v470 = vpop.permute.xlu0 %469
  %471 = vrot.lane.b32.xlu0 %v337, 90
  %v472 = vpop.permute.xlu0 %471
  %473 = vrot.lane.b32.xlu0 %v364, 90
  %v474 = vpop.permute.xlu0 %473
  %v475 = vsel %vm163, %v468, %v470
  %v476 = vsel %vm163, %v470, %v472
  %v477 = vsel %vm163, %v472, %v474
  %481 = vst [vmem:[#allocation2 + $0x60] sm:$0xf] %v475
  %482 = vst [vmem:[#allocation2 + $0x68] sm:$0xf] %v476
  %483 = vst [vmem:[#allocation2 + $0x70] sm:$0xf] %v477
  %v484 = vld [vmem:[%s1] sm:$0xf]
  %v485 = vld [vmem:[#allocation2] sm:$0xff]
  %v486 = vld [vmem:[#allocation2 + $0x8] sm:$0xff]
  %v487 = vld [vmem:[#allocation2 + $0x10] sm:$0xff]
  %v488 = vld [vmem:[#allocation2 + $0x18] sm:$0xff]
  %v489 = vld [vmem:[#allocation2 + $0x20] sm:$0xff]
  %v490 = vld [vmem:[#allocation2 + $0x28] sm:$0xff]
  %v491 = vld [vmem:[#allocation2 + $0x30] sm:$0xff]
  %v492 = vld [vmem:[#allocation2 + $0x38] sm:$0xff]
  %v493 = vld [vmem:[#allocation2 + $0x40] sm:$0xff]
  %v494 = vld [vmem:[#allocation2 + $0x48] sm:$0xff]
  %v495 = vld [vmem:[#allocation2 + $0x50] sm:$0xff]
  %v496 = vld [vmem:[#allocation2 + $0x58] sm:$0xff]
  %v497 = vld [vmem:[#allocation2 + $0x60] sm:$0xf]
  %v498 = vld [vmem:[#allocation2 + $0x68] sm:$0xf]
  %v499 = vld [vmem:[#allocation2 + $0x70] sm:$0xf]
  %v500 = vpack.c.bf16 %v488, %v485
  %v501 = vpack.c.bf16 %v489, %v486
  %v502 = vpack.c.bf16 %v490, %v487
  %v503 = vpack.c.bf16 %v494, %v491
  %v504 = vpack.c.bf16 %v495, %v492
  %v505 = vpack.c.bf16 %v496, %v493
  %v506 = vpack.c.bf16 %v497, %v497
  %v507 = vpack.c.bf16 %v498, %v498
  %v508 = vpack.c.bf16 %v499, %v499
  %v510 = vsel %vm198, %v484, 0
  %v513 = vsel %vm202, %v506, 0
  %v516 = vsel %vm202, %v507, 0
  %v519 = vsel %vm202, %v508, 0
  %521 = vmatprep.subr.bf16.mxu0 %v501
  %522 = vmatpush1.bf16.msra.mxu0 %v500
  %523 = vmatprep.subr.bf16.mxu0 %v504
  %524 = vmatpush1.bf16.msra.mxu0 %v503
  %525 = vmatprep.subr.bf16.mxu0 %v516
  %526 = vmatpush1.bf16.msra.mxu0 %v513
  %527 = vmatprep.subr.bf16.mxu0 0
  %528 = vmatpush1.bf16.msra.mxu0 0
  %529 = vmatprep.subr.bf16.mxu0 0
  %530 = vmatpush1.bf16.msra.mxu0 0
  %531 = vmatprep.subr.bf16.mxu0 0
  %532 = vmatpush1.bf16.msra.mxu0 0
  %533 = vmatprep.subr.bf16.mxu0 0
  %534 = vmatpush1.bf16.msra.mxu0 0
  %535 = vmatprep.subr.bf16.mxu0 0
  %536 = vmatpush1.bf16.msra.mxu0 0
  %537 = vmatprep.subr.bf16.mxu0 0
  %538 = vmatpush1.bf16.msra.mxu0 0
  %539 = vmatprep.subr.bf16.mxu0 0
  %540 = vmatpush1.bf16.msra.mxu0 0
  %541 = vmatprep.subr.bf16.mxu0 0
  %542 = vmatpush1.bf16.msra.mxu0 0
  %543 = vmatprep.subr.bf16.mxu0 0
  %544 = vmatpush1.bf16.msra.mxu0 0
  %545 = vmatprep.subr.bf16.mxu0 0
  %546 = vmatpush1.bf16.msra.mxu0 0
  %547 = vmatprep.subr.bf16.mxu0 0
  %548 = vmatpush1.bf16.msra.mxu0 0
  %549 = vmatprep.subr.bf16.mxu0 0
  %550 = vmatpush1.bf16.msra.mxu0 0
  %551 = vmatprep.subr.bf16.mxu0 0
  %552 = vmatpush1.bf16.msra.mxu0 0
  %553 = vmatprep.mubr.bf16.mxu0 0
  %554 = vmatmul.mubr.bf16.gmra.mrb[0].mxu0 %v510
  %v555 = vpop.f32.mrb[0].mxu0
  %v556 = vadd.f32 0.0, %v555
  %v557 = vpop.f32.mrb[0].mxu0
  %v558 = vadd.f32 0.0, %v557
  %v559 = vpop.f32.mrb[0].mxu0
  %v560 = vpop.f32.mrb[0].mxu0
  %561 = vdwg.mxu0
  %562 = vmatprep.subr.bf16.mxu0 0
  %563 = vmatpush1.bf16.msra.mxu0 %v502
  %564 = vmatprep.subr.bf16.mxu0 0
  %565 = vmatpush1.bf16.msra.mxu0 %v505
  %566 = vmatprep.subr.bf16.mxu0 0
  %567 = vmatpush1.bf16.msra.mxu0 %v519
  %568 = vmatprep.subr.bf16.mxu0 0
  %569 = vmatpush1.bf16.msra.mxu0 0
  %570 = vmatprep.subr.bf16.mxu0 0
  %571 = vmatpush1.bf16.msra.mxu0 0
  %572 = vmatprep.subr.bf16.mxu0 0
  %573 = vmatpush1.bf16.msra.mxu0 0
  %574 = vmatprep.subr.bf16.mxu0 0
  %575 = vmatpush1.bf16.msra.mxu0 0
  %576 = vmatprep.subr.bf16.mxu0 0
  %577 = vmatpush1.bf16.msra.mxu0 0
  %578 = vmatprep.subr.bf16.mxu0 0
  %579 = vmatpush1.bf16.msra.mxu0 0
  %580 = vmatprep.subr.bf16.mxu0 0
  %581 = vmatpush1.bf16.msra.mxu0 0
  %582 = vmatprep.subr.bf16.mxu0 0
  %583 = vmatpush1.bf16.msra.mxu0 0
  %584 = vmatprep.subr.bf16.mxu0 0
  %585 = vmatpush1.bf16.msra.mxu0 0
  %586 = vmatprep.subr.bf16.mxu0 0
  %587 = vmatpush1.bf16.msra.mxu0 0
  %588 = vmatprep.subr.bf16.mxu0 0
  %589 = vmatpush1.bf16.msra.mxu0 0
  %590 = vmatprep.subr.bf16.mxu0 0
  %591 = vmatpush1.bf16.msra.mxu0 0
  %592 = vmatprep.subr.bf16.mxu0 0
  %593 = vmatpush1.bf16.msra.mxu0 0
  %594 = vmatprep.mubr.bf16.mxu0 0
  %595 = vmatmul.mubr.bf16.gmra.mrb[0].mxu0 %v510
  %v596 = vpop.f32.mrb[0].mxu0
  %v597 = vadd.f32 0.0, %v596
  %v598 = vpop.f32.mrb[0].mxu0
  %v599 = vpop.f32.mrb[0].mxu0
  %v600 = vpop.f32.mrb[0].mxu0
  %601 = vdwg.mxu0
  %v602 = vmul.f32 %v556, %v297
  %v603 = vmul.f32 %v558, %v301
  %v604 = vmul.f32 %v597, %v305
  %v605 = vadd.f32 %v602, %v603
  %v606 = vadd.f32 %v605, %v604
  %607 = vadd.xlane.f32.xlu0 %v606
  %v608 = vpop.xlane.xlu0 %607
  %v609 = vmul.f32 %v608, 0.00390625
  %v610 = vsub.f32 %v556, %v609
  %v611 = vsub.f32 %v558, %v609
  %v612 = vsub.f32 %v597, %v609
  %v613 = vmul.f32 %v610, %v297
  %v614 = vmul.f32 %v611, %v301
  %v615 = vmul.f32 %v612, %v305
  %s616 = scalar_lea.vmem %s3, 8
  %617 = vst.msk [vmem:[%s616] sm:$0xff] %vm323, %v608
  %v618 = vmul.f32 %v613, %v613
  %v619 = vmul.f32 %v614, %v614
  %v620 = vmul.f32 %v615, %v615
  %v621 = vadd.f32 %v618, %v619
  %v622 = vadd.f32 %v621, %v620
  %623 = vadd.xlane.f32.xlu0 %v622
  %v624 = vpop.xlane.xlu0 %623
  %625 = vst.msk [vmem:[%s616] sm:$0xff] %vm332, %v624
  // Predicated region
  $region14: #{identical_block_forward.2} parent=0 // pred_check
    _
  $region15: #{identical_block_forward.2} parent=0 // pred_check_branch
    %627 = sbr.rel (0) target = $region17
  $region16: #{identical_block_forward.2} parent=0 // pred_region
    _
  $region17: #{identical_block_forward.2} parent=0 // pred_fallthru
    _
  // Predicated region
  $region18: #{identical_block_forward.2} parent=0 // pred_check
    _
  $region19: #{identical_block_forward.2} parent=0 // pred_check_branch
    %629 = sbr.rel (0) target = $region21
  $region20: #{identical_block_forward.2} parent=0 // pred_region
    _
  $region21: #{identical_block_forward.2} parent=0 // pred_fallthru
    _

</llo_original>
